<compile_context>
chip_gen: v7x
topology: tpu7x:2x2x1
jax: 0.10.0
libtpu: 0.0.40
codegen_flags: <defaults>
</compile_context>

<pallas_src>
import functools
import math

import jax
import jax.numpy as jnp
from jax.experimental import pallas as pl
from jax.experimental.pallas import tpu as pltpu


# --------------------------------------------------------------------------
# small helpers
# --------------------------------------------------------------------------
def _round_up(x, m):
    return (x + m - 1) // m * m


def _pick_block(n, max_b, step=1):
    """Largest block <= max_b that divides n (stepping down by `step`)."""
    b = min(n, max_b)
    while n % b:
        b -= step
    return b


def _choose_time_block(T, max_block=32):
    """Power-of-two time block in [8, max_block]; minimize padded length, then
    prefer the largest block (amortizes ~0.35us per-grid-step overhead)."""
    best_tt, best_tp = None, None
    tt = 8
    while tt <= max_block:
        tp = _round_up(T, tt)
        if best_tp is None or tp < best_tp or (tp == best_tp and tt > best_tt):
            best_tt, best_tp = tt, tp
        tt *= 2
    return best_tt, best_tp


# --------------------------------------------------------------------------
# Fused LSTM layer kernel: grid over time blocks (sequential).
# Per grid step:
#   Zx = x_block @ W_ih + bias            (one big MXU matmul per block)
#   for t in block: z = Zx[t] + h @ W_hh  (unrolled recurrence, h/c in VMEM scratch)
# Gate layout along the 4Hp axis is [i, f, o, g].
# --------------------------------------------------------------------------
def _lstm_layer_kernel(x_ref, wih_ref, whh_ref, b_ref, h0_ref, c0_ref,
                       y_ref, hT_ref, cT_ref, h_st, c_st,
                       *, t_valid, mask_tail):
    tb = pl.program_id(0)
    tt, bp, din = x_ref.shape
    hp = h0_ref.shape[1]

    @pl.when(tb == 0)
    def _():
        h_st[...] = h0_ref[...]
        c_st[...] = c0_ref[...]

    wih = wih_ref[...]                                  # (Din, 4Hp) bf16
    whh = whh_ref[...]                                  # (Hp, 4Hp) bf16

    # Fused input projection for the whole time block (M = Tt*Bp rows).
    x = x_ref[...].reshape(tt * bp, din)                # bf16
    zx = jnp.dot(x, wih, preferred_element_type=jnp.float32) + b_ref[...]
    zx = zx.reshape(tt, bp, 4 * hp)                     # f32

    h = h_st[...]                                       # (Bp, Hp) f32
    c = c_st[...]

    for t in range(tt):                                 # unrolled over the block
        z = zx[t] + jnp.dot(h.astype(whh.dtype), whh,
                            preferred_element_type=jnp.float32)   # (Bp, 4Hp)
        # Hp is a multiple of 128 => lane-aligned gate slices (no XLU shuffles).
        s = jax.nn.sigmoid(z[:, :3 * hp])               # [i | f | o] in one pass
        i_g = s[:, 0 * hp:1 * hp]
        f_g = s[:, 1 * hp:2 * hp]
        o_g = s[:, 2 * hp:3 * hp]
        g_g = jnp.tanh(z[:, 3 * hp:])
        c_new = f_g * c + i_g * g_g
        h_new = o_g * jnp.tanh(c_new)
        if mask_tail:
            # Freeze state on padded tail timesteps (pure-arithmetic mask; exact
            # 0/1 scalar, guaranteed to lower).
            m = ((tb * tt + t) < t_valid).astype(jnp.float32)
            c = c + m * (c_new - c)
            h = h + m * (h_new - h)
        else:
            c = c_new
            h = h_new
        y_ref[t] = h.astype(y_ref.dtype)                # bf16 lane-dense store

    h_st[...] = h
    c_st[...] = c

    @pl.when(tb == pl.num_programs(0) - 1)              # write final state once
    def _():
        hT_ref[...] = h
        cT_ref[...] = c


def lstm_layer(x, w_ih, w_hh, bias, h0, c0, *, t_valid, time_block):
    """x: (Tp, Bp, Din) bf16; w_ih: (Din, 4Hp) bf16; w_hh: (Hp, 4Hp) bf16;
    bias: (1, 4Hp) f32; h0/c0: (Bp, Hp) f32.  Tp % time_block == 0.
    Returns y (Tp, Bp, Hp) bf16, hT/cT (Bp, Hp) f32."""
    Tp, Bp, Din = x.shape
    fourHp = w_hh.shape[1]
    Hp = fourHp // 4
    Tt = time_block
    assert Tp % Tt == 0
    grid = (Tp // Tt,)

    kernel = functools.partial(_lstm_layer_kernel, t_valid=t_valid,
                               mask_tail=(t_valid < Tp))
    out_shapes = (
        jax.ShapeDtypeStruct((Tp, Bp, Hp), jnp.bfloat16),
        jax.ShapeDtypeStruct((Bp, Hp), jnp.float32),
        jax.ShapeDtypeStruct((Bp, Hp), jnp.float32),
    )
    return pl.pallas_call(
        kernel,
        out_shape=out_shapes,
        grid_spec=pltpu.PrefetchScalarGridSpec(
            num_scalar_prefetch=0,
            grid=grid,
            in_specs=[
                pl.BlockSpec((Tt, Bp, Din), lambda tb: (tb, 0, 0)),
                pl.BlockSpec((Din, fourHp), lambda tb: (0, 0)),
                pl.BlockSpec((Hp, fourHp), lambda tb: (0, 0)),
                pl.BlockSpec((1, fourHp), lambda tb: (0, 0)),
                pl.BlockSpec((Bp, Hp), lambda tb: (0, 0)),
                pl.BlockSpec((Bp, Hp), lambda tb: (0, 0)),
            ],
            out_specs=[
                pl.BlockSpec((Tt, Bp, Hp), lambda tb: (tb, 0, 0)),
                pl.BlockSpec((Bp, Hp), lambda tb: (0, 0)),
                pl.BlockSpec((Bp, Hp), lambda tb: (0, 0)),
            ],
            scratch_shapes=[pltpu.VMEM((Bp, Hp), jnp.float32),
                            pltpu.VMEM((Bp, Hp), jnp.float32)],
        ),
        compiler_params=pltpu.CompilerParams(
            dimension_semantics=("arbitrary",)),   # sequential recurrence
    )(x, w_ih, w_hh, bias, h0, c0)


# --------------------------------------------------------------------------
# Vocab projection: x fully VMEM-resident, grid only over vocab tiles so lin_w
# streams from HBM exactly once.  Output is batch-major (Bp, Tp, Vp) directly.
# --------------------------------------------------------------------------
def _vocab_proj_kernel(x_ref, w_ref, b_ref, o_ref):
    bp, tp, hp = x_ref.shape
    x = x_ref[...].reshape(bp * tp, hp)                 # bf16
    acc = jnp.dot(x, w_ref[...], preferred_element_type=jnp.float32)
    acc = acc + b_ref[...]                              # (bp*tp, Td) + (1, Td)
    o_ref[...] = acc.reshape(bp, tp, acc.shape[-1])


def vocab_projection(x_btd, w, b, *, max_col_block=512):
    """x_btd: (Bp, Tp, Hp) bf16, w: (Hp, Vp) bf16, b: (1, Vp) f32."""
    Bp, Tp, Hp = x_btd.shape
    Vp = w.shape[1]
    Td = _pick_block(Vp, max_col_block, step=128)
    grid = (Vp // Td,)

    return pl.pallas_call(
        _vocab_proj_kernel,
        out_shape=jax.ShapeDtypeStruct((Bp, Tp, Vp), jnp.float32),
        grid_spec=pltpu.PrefetchScalarGridSpec(
            num_scalar_prefetch=0,
            grid=grid,
            in_specs=[
                pl.BlockSpec((Bp, Tp, Hp), lambda di: (0, 0, 0)),   # resident x
                pl.BlockSpec((Hp, Td), lambda di: (0, di)),
                pl.BlockSpec((1, Td), lambda di: (0, di)),
            ],
            out_specs=pl.BlockSpec((Bp, Tp, Td), lambda di: (0, 0, di)),
        ),
        compiler_params=pltpu.CompilerParams(
            dimension_semantics=("parallel",)),
    )(x_btd, w, b)


# --------------------------------------------------------------------------
# Parameter init (deterministic, PyTorch-like uniform(-1/sqrt(H), 1/sqrt(H)))
# Weights are stored pre-transposed: w_ih (in, 4H), w_hh (H, 4H), lin_w (H, V).
# PyTorch gate order along 4H is [i, f, g, o].
# --------------------------------------------------------------------------
def init_decoder_params(key, emb_dim, hidden_size, num_layers, vocab_size):
    keys = jax.random.split(key, 3 + 4 * num_layers)
    k = 1.0 / math.sqrt(hidden_size)
    params = {}
    params["embedding"] = jax.random.normal(keys[0], (vocab_size, emb_dim),
                                            jnp.float32)
    params["w_ih"], params["w_hh"], params["bias"] = [], [], []
    for l in range(num_layers):
        in_size = emb_dim if l == 0 else hidden_size
        kw = keys[3 + 4 * l: 3 + 4 * (l + 1)]
        w_ih = jax.random.uniform(kw[0], (in_size, 4 * hidden_size),
                                  jnp.float32, -k, k)
        w_hh = jax.random.uniform(kw[1], (hidden_size, 4 * hidden_size),
                                  jnp.float32, -k, k)
        b_ih = jax.random.uniform(kw[2], (4 * hidden_size,), jnp.float32, -k, k)
        b_hh = jax.random.uniform(kw[3], (4 * hidden_size,), jnp.float32, -k, k)
        params["w_ih"].append(w_ih)
        params["w_hh"].append(w_hh)
        params["bias"].append((b_ih + b_hh).reshape(1, 4 * hidden_size))
    params["lin_w"] = jax.random.uniform(keys[1], (hidden_size, vocab_size),
                                         jnp.float32, -k, k)
    params["lin_b"] = jax.random.uniform(keys[2], (1, vocab_size),
                                         jnp.float32, -k, k)
    return params


_GATE_PERM = (0, 1, 3, 2)   # PyTorch [i, f, g, o] -> kernel [i, f, o, g]


def _pad_gated(w, din_p, H, Hp, dtype):
    """(din, 4H) -> (din_p, 4Hp): reorder gates to [i,f,o,g], zero-pad per gate."""
    din = w.shape[0]
    w4 = w.reshape(din, 4, H)[:, _GATE_PERM, :]
    w4 = jnp.pad(w4, ((0, din_p - din), (0, 0), (0, Hp - H)))
    return w4.reshape(din_p, 4 * Hp).astype(dtype)


def prepare_decoder_params(params, emb_dim, hidden_size, num_layers, vocab_size):
    """Pad to lane/sublane-friendly shapes and cast MXU operands to bf16."""
    H = hidden_size
    Hp = _round_up(H, 128)
    Vp = _round_up(vocab_size, 128)
    prep = {"embedding": params["embedding"],
            "H": H, "Hp": Hp, "V": vocab_size, "Vp": Vp}
    prep["w_ih"], prep["w_hh"], prep["bias"] = [], [], []
    for l in range(num_layers):
        din_p = emb_dim if l == 0 else Hp
        prep["w_ih"].append(_pad_gated(params["w_ih"][l], din_p, H, Hp,
                                       jnp.bfloat16))
        prep["w_hh"].append(_pad_gated(params["w_hh"][l], Hp, H, Hp,
                                       jnp.bfloat16))
        prep["bias"].append(_pad_gated(params["bias"][l], 1, H, Hp, jnp.float32))
    prep["lin_w"] = jnp.pad(params["lin_w"],
                            ((0, Hp - H), (0, Vp - vocab_size))).astype(jnp.bfloat16)
    prep["lin_b"] = jnp.pad(params["lin_b"], ((0, 0), (0, Vp - vocab_size)))
    return prep


# --------------------------------------------------------------------------
# Decoder forward (eval semantics: dropout == identity)
# --------------------------------------------------------------------------
def decoder_forward(prep, inputs, hidden, *, max_time_block=32):
    """inputs: (B, T) int32 token ids;  hidden = (h, c), each (L, B, H).

    Returns (logits, (h, c)) matching the PyTorch module:
      logits: (B, T, V) (squeezed on dim 0 if B == 1);  h, c: (L, B, H)
    """
    h0s, c0s = hidden
    L, B, H = h0s.shape
    Hp, V, Vp = prep["Hp"], prep["V"], prep["Vp"]
    Bp = _round_up(B, 8)
    T = inputs.shape[1]
    Tt, Tp = _choose_time_block(T, max_time_block)

    # Embedding gather, emitted directly time-major; dropout == identity (eval).
    x = jnp.take(prep["embedding"], inputs.T, axis=0)            # (T, B, E)
    x = jnp.pad(x, ((0, Tp - T), (0, Bp - B), (0, 0)))           # (Tp, Bp, E)
    x = x.astype(jnp.bfloat16)                                   # bf16 activations

    def pad_state(s):                                            # (B,H) -> (Bp,Hp)
        return jnp.pad(s, ((0, Bp - B), (0, Hp - H)))

    h_fin, c_fin = [], []
    for l in range(L):
        x, hT, cT = lstm_layer(x, prep["w_ih"][l], prep["w_hh"][l],
                               prep["bias"][l],
                               pad_state(h0s[l]), pad_state(c0s[l]),
                               t_valid=T, time_block=Tt)
        # inter-layer dropout: identity in inference mode
        h_fin.append(hT[:B, :H])
        c_fin.append(cT[:B, :H])

    # Batch-major vocab GEMM: transpose the small bf16 activation (Tp,Bp,Hp)
    # instead of the large (B,T,V) f32 logits; lin_w then streams once.
    x_bt = jnp.transpose(x, (1, 0, 2))                           # (Bp, Tp, Hp) bf16
    logits_p = vocab_projection(x_bt, prep["lin_w"], prep["lin_b"])  # (Bp, Tp, Vp)
    logits = logits_p[:B, :T, :V]                                # (B, T, V)
    if logits.shape[0] == 1:                                     # torch.squeeze(logits, 0)
        logits = jnp.squeeze(logits, axis=0)
    return logits, (jnp.stack(h_fin), jnp.stack(c_fin))


# --------------------------------------------------------------------------
# Pure-JAX reference (unpadded, f32, PyTorch gate order) for a sanity check
# --------------------------------------------------------------------------
def decoder_reference(params, inputs, hidden):
    h0s, c0s = hidden
    num_layers = h0s.shape[0]
    emb = jnp.take(params["embedding"], inputs, axis=0)
    x = jnp.transpose(emb, (1, 0, 2)).astype(jnp.float32)        # (T, B, E)

    h_fin, c_fin = [], []
    for l in range(num_layers):
        w_ih, w_hh, b = params["w_ih"][l], params["w_hh"][l], params["bias"][l]
        H = w_hh.shape[0]

        def step(carry, xt):
            h, c = carry
            z = xt @ w_ih + h @ w_hh + b
            i = jax.nn.sigmoid(z[:, 0 * H:1 * H])
            f = jax.nn.sigmoid(z[:, 1 * H:2 * H])
            g = jnp.tanh(z[:, 2 * H:3 * H])
            o = jax.nn.sigmoid(z[:, 3 * H:4 * H])
            c = f * c + i * g
            h = o * jnp.tanh(c)
            return (h, c), h

        (hT, cT), y = jax.lax.scan(step, (h0s[l], c0s[l]), x)
        x = y
        h_fin.append(hT)
        c_fin.append(cT)

    logits = x @ params["lin_w"] + params["lin_b"]               # (T, B, V)
    logits = jnp.transpose(logits, (1, 0, 2))
    if logits.shape[0] == 1:
        logits = jnp.squeeze(logits, axis=0)
    return logits, (jnp.stack(h_fin), jnp.stack(c_fin))


# --------------------------------------------------------------------------
if __name__ == "__main__":
    EMB_DIM = 32
    HIDDEN = 32
    NUM_LAYERS = 2
    VOCAB = 50
    B, T = 2, 8

    key = jax.random.PRNGKey(0)
    k_param, k_tok, k_h, k_c = jax.random.split(key, 4)

    params = init_decoder_params(k_param, EMB_DIM, HIDDEN, NUM_LAYERS, VOCAB)
    prep = prepare_decoder_params(params, EMB_DIM, HIDDEN, NUM_LAYERS, VOCAB)

    tokens = jax.random.randint(k_tok, (B, T), 0, VOCAB, dtype=jnp.int32)
    h0 = jax.random.normal(k_h, (NUM_LAYERS, B, HIDDEN), jnp.float32) * 0.1
    c0 = jax.random.normal(k_c, (NUM_LAYERS, B, HIDDEN), jnp.float32) * 0.1

    logits, (hT, cT) = decoder_forward(prep, tokens, (h0, c0))
    jax.block_until_ready((logits, hT, cT))

    # sanity check against a pure-JAX f32 reference (kernel uses bf16 MXU operands /
    # bf16 inter-layer activations with f32 accumulation, so tolerances are loosened)
    ref_logits, (ref_h, ref_c) = decoder_reference(params, tokens, (h0, c0))
    assert logits.shape == (B, T, VOCAB)
    assert hT.shape == (NUM_LAYERS, B, HIDDEN) and cT.shape == (NUM_LAYERS, B, HIDDEN)
    assert jnp.allclose(logits, ref_logits, rtol=3e-2, atol=3e-2)
    assert jnp.allclose(hT, ref_h, rtol=3e-2, atol=3e-2)
    assert jnp.allclose(cT, ref_c, rtol=3e-2, atol=3e-2)

    # odd sequence length exercises the padded-time masking path
    T2 = 5
    tokens2 = jax.random.randint(jax.random.PRNGKey(7), (B, T2), 0, VOCAB,
                                 dtype=jnp.int32)
    logits2, (hT2, cT2) = decoder_forward(prep, tokens2, (h0, c0))
    jax.block_until_ready((logits2, hT2, cT2))
    ref_logits2, (ref_h2, ref_c2) = decoder_reference(params, tokens2, (h0, c0))
    assert logits2.shape == (B, T2, VOCAB)
    assert jnp.allclose(logits2, ref_logits2, rtol=3e-2, atol=3e-2)
    assert jnp.allclose(hT2, ref_h2, rtol=3e-2, atol=3e-2)
    assert jnp.allclose(cT2, ref_c2, rtol=3e-2, atol=3e-2)

    print("KERNEL_OK")
</pallas_src>

<mosaic_0001>
module attributes {stable_mosaic.version = 11 : i64} {
  func.func @_lstm_layer_kernel(%arg0: i32, %arg1: memref<8x8x32xbf16, #tpu.memory_space<vmem>>, %arg2: memref<32x512xbf16, #tpu.memory_space<vmem>>, %arg3: memref<128x512xbf16, #tpu.memory_space<vmem>>, %arg4: memref<1x512xf32, #tpu.memory_space<vmem>>, %arg5: memref<8x128xf32, #tpu.memory_space<vmem>>, %arg6: memref<8x128xf32, #tpu.memory_space<vmem>>, %arg7: memref<8x8x128xbf16, #tpu.memory_space<vmem>>, %arg8: memref<8x128xf32, #tpu.memory_space<vmem>>, %arg9: memref<8x128xf32, #tpu.memory_space<vmem>>, %arg10: memref<8x128xf32, #tpu.memory_space<vmem>>, %arg11: memref<8x128xf32, #tpu.memory_space<vmem>>) attributes {dimension_semantics = [#tpu.dimension_semantics<arbitrary>], iteration_bounds = array<i64: 1>, scalar_prefetch = 0 : i64, scratch_operands = 2 : i64, tpu.core_type = #tpu.core_type<tc>, window_params = [{transform_indices = @transform_0, window_bounds = array<i64: 8, 8, 32>}, {pipeline_mode = #tpu.pipeline_mode<synchronous>, transform_indices = @transform_1, window_bounds = array<i64: 32, 512>}, {pipeline_mode = #tpu.pipeline_mode<synchronous>, transform_indices = @transform_2, window_bounds = array<i64: 128, 512>}, {pipeline_mode = #tpu.pipeline_mode<synchronous>, transform_indices = @transform_3, window_bounds = array<i64: 1, 512>}, {pipeline_mode = #tpu.pipeline_mode<synchronous>, transform_indices = @transform_4, window_bounds = array<i64: 8, 128>}, {pipeline_mode = #tpu.pipeline_mode<synchronous>, transform_indices = @transform_5, window_bounds = array<i64: 8, 128>}, {transform_indices = @transform_6, window_bounds = array<i64: 8, 8, 128>}, {pipeline_mode = #tpu.pipeline_mode<synchronous>, transform_indices = @transform_7, window_bounds = array<i64: 8, 128>}, {pipeline_mode = #tpu.pipeline_mode<synchronous>, transform_indices = @transform_8, window_bounds = array<i64: 8, 128>}]} {
    %c0_i32 = arith.constant 0 : i32
    %0 = arith.cmpi eq, %arg0, %c0_i32 : i32
    %1 = arith.extui %0 : i1 to i32
    %c0_i32_0 = arith.constant 0 : i32
    %2 = arith.cmpi ne, %1, %c0_i32_0 : i32
    scf.if %2 {
      %c0_52 = arith.constant 0 : index
      %c0_53 = arith.constant 0 : index
      %219 = vector.load %arg5[%c0_52, %c0_53] : memref<8x128xf32, #tpu.memory_space<vmem>>, vector<8x128xf32>
      %c0_54 = arith.constant 0 : index
      %c0_55 = arith.constant 0 : index
      %220 = vector.load %arg10[%c0_54, %c0_55] : memref<8x128xf32, #tpu.memory_space<vmem>>, vector<8x128xf32>
      tpu.vector_store %arg10[%c0_54, %c0_55], %219 {strides = array<i32>} : memref<8x128xf32, #tpu.memory_space<vmem>>, vector<8x128xf32>,
      %c0_56 = arith.constant 0 : index
      %c0_57 = arith.constant 0 : index
      %221 = vector.load %arg6[%c0_56, %c0_57] : memref<8x128xf32, #tpu.memory_space<vmem>>, vector<8x128xf32>
      %c0_58 = arith.constant 0 : index
      %c0_59 = arith.constant 0 : index
      %222 = vector.load %arg11[%c0_58, %c0_59] : memref<8x128xf32, #tpu.memory_space<vmem>>, vector<8x128xf32>
      tpu.vector_store %arg11[%c0_58, %c0_59], %221 {strides = array<i32>} : memref<8x128xf32, #tpu.memory_space<vmem>>, vector<8x128xf32>,
    } else {
    }
    %c0 = arith.constant 0 : index
    %c0_1 = arith.constant 0 : index
    %3 = vector.load %arg2[%c0, %c0_1] : memref<32x512xbf16, #tpu.memory_space<vmem>>, vector<32x512xbf16>
    %c0_2 = arith.constant 0 : index
    %c0_3 = arith.constant 0 : index
    %4 = vector.load %arg3[%c0_2, %c0_3] : memref<128x512xbf16, #tpu.memory_space<vmem>>, vector<128x512xbf16>
    %c0_4 = arith.constant 0 : index
    %c0_5 = arith.constant 0 : index
    %c0_6 = arith.constant 0 : index
    %5 = vector.load %arg1[%c0_4, %c0_5, %c0_6] : memref<8x8x32xbf16, #tpu.memory_space<vmem>>, vector<8x8x32xbf16>
    %6 = vector.shape_cast %5 : vector<8x8x32xbf16> to vector<64x32xbf16>
    %cst = arith.constant dense<0.000000e+00> : vector<64x512xf32>
    %7 = tpu.matmul %6, %3, %cst {dimension_numbers = #tpu.dot_dimension_numbers<[1], [0], [0], [1], [0, 0, 1, 1], [], []>} : vector<64x32xbf16>, vector<32x512xbf16>, vector<64x512xf32> -> vector<64x512xf32>
    %c0_7 = arith.constant 0 : index
    %c0_8 = arith.constant 0 : index
    %8 = vector.load %arg4[%c0_7, %c0_8] : memref<1x512xf32, #tpu.memory_space<vmem>>, vector<1x512xf32>
    %9 = vector.broadcast %8 : vector<1x512xf32> to vector<64x512xf32>
    %10 = arith.addf %7, %9 : vector<64x512xf32>
    %11 = vector.shape_cast %10 : vector<64x512xf32> to vector<8x8x512xf32>
    %c0_9 = arith.constant 0 : index
    %c0_10 = arith.constant 0 : index
    %12 = vector.load %arg10[%c0_9, %c0_10] : memref<8x128xf32, #tpu.memory_space<vmem>>, vector<8x128xf32>
    %c0_11 = arith.constant 0 : index
    %c0_12 = arith.constant 0 : index
    %13 = vector.load %arg11[%c0_11, %c0_12] : memref<8x128xf32, #tpu.memory_space<vmem>>, vector<8x128xf32>
    %14 = vector.extract_strided_slice %11 {offsets = [0, 0, 0], sizes = [1, 8, 512], strides = [1, 1, 1]} : vector<8x8x512xf32> to vector<1x8x512xf32>
    %15 = vector.shape_cast %14 : vector<1x8x512xf32> to vector<8x512xf32>
    %16 = arith.truncf %12 : vector<8x128xf32> to vector<8x128xbf16>
    %cst_13 = arith.constant dense<0.000000e+00> : vector<8x512xf32>
    %17 = tpu.matmul %16, %4, %cst_13 {dimension_numbers = #tpu.dot_dimension_numbers<[1], [0], [0], [1], [0, 0, 1, 1], [], []>} : vector<8x128xbf16>, vector<128x512xbf16>, vector<8x512xf32> -> vector<8x512xf32>
    %18 = arith.addf %15, %17 : vector<8x512xf32>
    %19 = vector.extract_strided_slice %18 {offsets = [0, 0], sizes = [8, 384], strides = [1, 1]} : vector<8x512xf32> to vector<8x384xf32>
    %20 = arith.negf %19 : vector<8x384xf32>
    %21 = math.exp %20 : vector<8x384xf32>
    %cst_14 = arith.constant 1.000000e+00 : f32
    %22 = vector.broadcast %cst_14 : f32 to vector<8x384xf32>
    %23 = arith.addf %22, %21 : vector<8x384xf32>
    %24 = arith.divf %22, %23 : vector<8x384xf32>
    %25 = vector.extract_strided_slice %24 {offsets = [0, 0], sizes = [8, 128], strides = [1, 1]} : vector<8x384xf32> to vector<8x128xf32>
    %26 = vector.extract_strided_slice %24 {offsets = [0, 128], sizes = [8, 128], strides = [1, 1]} : vector<8x384xf32> to vector<8x128xf32>
    %27 = vector.extract_strided_slice %24 {offsets = [0, 256], sizes = [8, 128], strides = [1, 1]} : vector<8x384xf32> to vector<8x128xf32>
    %28 = vector.extract_strided_slice %18 {offsets = [0, 384], sizes = [8, 128], strides = [1, 1]} : vector<8x512xf32> to vector<8x128xf32>
    %29 = math.tanh %28 : vector<8x128xf32>
    %30 = arith.mulf %26, %13 : vector<8x128xf32>
    %31 = arith.mulf %25, %29 : vector<8x128xf32>
    %32 = arith.addf %30, %31 : vector<8x128xf32>
    %33 = math.tanh %32 : vector<8x128xf32>
    %34 = arith.mulf %27, %33 : vector<8x128xf32>
    %35 = arith.truncf %34 : vector<8x128xf32> to vector<8x128xbf16>
    %c0_15 = arith.constant 0 : index
    %c0_16 = arith.constant 0 : index
    %c0_17 = arith.constant 0 : index
    %36 = vector.load %arg7[%c0_15, %c0_16, %c0_17] : memref<8x8x128xbf16, #tpu.memory_space<vmem>>, vector<1x8x128xbf16>
    %37 = vector.shape_cast %36 : vector<1x8x128xbf16> to vector<8x128xbf16>
    %38 = vector.shape_cast %35 : vector<8x128xbf16> to vector<1x8x128xbf16>
    tpu.vector_store %arg7[%c0_15, %c0_16, %c0_17], %38 {strides = array<i32>} : memref<8x8x128xbf16, #tpu.memory_space<vmem>>, vector<1x8x128xbf16>,
    %39 = vector.extract_strided_slice %11 {offsets = [1, 0, 0], sizes = [1, 8, 512], strides = [1, 1, 1]} : vector<8x8x512xf32> to vector<1x8x512xf32>
    %40 = vector.shape_cast %39 : vector<1x8x512xf32> to vector<8x512xf32>
    %41 = arith.truncf %34 : vector<8x128xf32> to vector<8x128xbf16>
    %cst_18 = arith.constant dense<0.000000e+00> : vector<8x512xf32>
    %42 = tpu.matmul %41, %4, %cst_18 {dimension_numbers = #tpu.dot_dimension_numbers<[1], [0], [0], [1], [0, 0, 1, 1], [], []>} : vector<8x128xbf16>, vector<128x512xbf16>, vector<8x512xf32> -> vector<8x512xf32>
    %43 = arith.addf %40, %42 : vector<8x512xf32>
    %44 = vector.extract_strided_slice %43 {offsets = [0, 0], sizes = [8, 384], strides = [1, 1]} : vector<8x512xf32> to vector<8x384xf32>
    %45 = arith.negf %44 : vector<8x384xf32>
    %46 = math.exp %45 : vector<8x384xf32>
    %cst_19 = arith.constant 1.000000e+00 : f32
    %47 = vector.broadcast %cst_19 : f32 to vector<8x384xf32>
    %48 = arith.addf %47, %46 : vector<8x384xf32>
    %49 = arith.divf %47, %48 : vector<8x384xf32>
    %50 = vector.extract_strided_slice %49 {offsets = [0, 0], sizes = [8, 128], strides = [1, 1]} : vector<8x384xf32> to vector<8x128xf32>
    %51 = vector.extract_strided_slice %49 {offsets = [0, 128], sizes = [8, 128], strides = [1, 1]} : vector<8x384xf32> to vector<8x128xf32>
    %52 = vector.extract_strided_slice %49 {offsets = [0, 256], sizes = [8, 128], strides = [1, 1]} : vector<8x384xf32> to vector<8x128xf32>
    %53 = vector.extract_strided_slice %43 {offsets = [0, 384], sizes = [8, 128], strides = [1, 1]} : vector<8x512xf32> to vector<8x128xf32>
    %54 = math.tanh %53 : vector<8x128xf32>
    %55 = arith.mulf %51, %32 : vector<8x128xf32>
    %56 = arith.mulf %50, %54 : vector<8x128xf32>
    %57 = arith.addf %55, %56 : vector<8x128xf32>
    %58 = math.tanh %57 : vector<8x128xf32>
    %59 = arith.mulf %52, %58 : vector<8x128xf32>
    %60 = arith.truncf %59 : vector<8x128xf32> to vector<8x128xbf16>
    %c1 = arith.constant 1 : index
    %c0_20 = arith.constant 0 : index
    %c0_21 = arith.constant 0 : index
    %61 = vector.load %arg7[%c1, %c0_20, %c0_21] : memref<8x8x128xbf16, #tpu.memory_space<vmem>>, vector<1x8x128xbf16>
    %62 = vector.shape_cast %61 : vector<1x8x128xbf16> to vector<8x128xbf16>
    %63 = vector.shape_cast %60 : vector<8x128xbf16> to vector<1x8x128xbf16>
    tpu.vector_store %arg7[%c1, %c0_20, %c0_21], %63 {strides = array<i32>} : memref<8x8x128xbf16, #tpu.memory_space<vmem>>, vector<1x8x128xbf16>,
    %64 = vector.extract_strided_slice %11 {offsets = [2, 0, 0], sizes = [1, 8, 512], strides = [1, 1, 1]} : vector<8x8x512xf32> to vector<1x8x512xf32>
    %65 = vector.shape_cast %64 : vector<1x8x512xf32> to vector<8x512xf32>
    %66 = arith.truncf %59 : vector<8x128xf32> to vector<8x128xbf16>
    %cst_22 = arith.constant dense<0.000000e+00> : vector<8x512xf32>
    %67 = tpu.matmul %66, %4, %cst_22 {dimension_numbers = #tpu.dot_dimension_numbers<[1], [0], [0], [1], [0, 0, 1, 1], [], []>} : vector<8x128xbf16>, vector<128x512xbf16>, vector<8x512xf32> -> vector<8x512xf32>
    %68 = arith.addf %65, %67 : vector<8x512xf32>
    %69 = vector.extract_strided_slice %68 {offsets = [0, 0], sizes = [8, 384], strides = [1, 1]} : vector<8x512xf32> to vector<8x384xf32>
    %70 = arith.negf %69 : vector<8x384xf32>
    %71 = math.exp %70 : vector<8x384xf32>
    %cst_23 = arith.constant 1.000000e+00 : f32
    %72 = vector.broadcast %cst_23 : f32 to vector<8x384xf32>
    %73 = arith.addf %72, %71 : vector<8x384xf32>
    %74 = arith.divf %72, %73 : vector<8x384xf32>
    %75 = vector.extract_strided_slice %74 {offsets = [0, 0], sizes = [8, 128], strides = [1, 1]} : vector<8x384xf32> to vector<8x128xf32>
    %76 = vector.extract_strided_slice %74 {offsets = [0, 128], sizes = [8, 128], strides = [1, 1]} : vector<8x384xf32> to vector<8x128xf32>
    %77 = vector.extract_strided_slice %74 {offsets = [0, 256], sizes = [8, 128], strides = [1, 1]} : vector<8x384xf32> to vector<8x128xf32>
    %78 = vector.extract_strided_slice %68 {offsets = [0, 384], sizes = [8, 128], strides = [1, 1]} : vector<8x512xf32> to vector<8x128xf32>
    %79 = math.tanh %78 : vector<8x128xf32>
    %80 = arith.mulf %76, %57 : vector<8x128xf32>
    %81 = arith.mulf %75, %79 : vector<8x128xf32>
    %82 = arith.addf %80, %81 : vector<8x128xf32>
    %83 = math.tanh %82 : vector<8x128xf32>
    %84 = arith.mulf %77, %83 : vector<8x128xf32>
    %85 = arith.truncf %84 : vector<8x128xf32> to vector<8x128xbf16>
    %c2 = arith.constant 2 : index
    %c0_24 = arith.constant 0 : index
    %c0_25 = arith.constant 0 : index
    %86 = vector.load %arg7[%c2, %c0_24, %c0_25] : memref<8x8x128xbf16, #tpu.memory_space<vmem>>, vector<1x8x128xbf16>
    %87 = vector.shape_cast %86 : vector<1x8x128xbf16> to vector<8x128xbf16>
    %88 = vector.shape_cast %85 : vector<8x128xbf16> to vector<1x8x128xbf16>
    tpu.vector_store %arg7[%c2, %c0_24, %c0_25], %88 {strides = array<i32>} : memref<8x8x128xbf16, #tpu.memory_space<vmem>>, vector<1x8x128xbf16>,
    %89 = vector.extract_strided_slice %11 {offsets = [3, 0, 0], sizes = [1, 8, 512], strides = [1, 1, 1]} : vector<8x8x512xf32> to vector<1x8x512xf32>
    %90 = vector.shape_cast %89 : vector<1x8x512xf32> to vector<8x512xf32>
    %91 = arith.truncf %84 : vector<8x128xf32> to vector<8x128xbf16>
    %cst_26 = arith.constant dense<0.000000e+00> : vector<8x512xf32>
    %92 = tpu.matmul %91, %4, %cst_26 {dimension_numbers = #tpu.dot_dimension_numbers<[1], [0], [0], [1], [0, 0, 1, 1], [], []>} : vector<8x128xbf16>, vector<128x512xbf16>, vector<8x512xf32> -> vector<8x512xf32>
    %93 = arith.addf %90, %92 : vector<8x512xf32>
    %94 = vector.extract_strided_slice %93 {offsets = [0, 0], sizes = [8, 384], strides = [1, 1]} : vector<8x512xf32> to vector<8x384xf32>
    %95 = arith.negf %94 : vector<8x384xf32>
    %96 = math.exp %95 : vector<8x384xf32>
    %cst_27 = arith.constant 1.000000e+00 : f32
    %97 = vector.broadcast %cst_27 : f32 to vector<8x384xf32>
    %98 = arith.addf %97, %96 : vector<8x384xf32>
    %99 = arith.divf %97, %98 : vector<8x384xf32>
    %100 = vector.extract_strided_slice %99 {offsets = [0, 0], sizes = [8, 128], strides = [1, 1]} : vector<8x384xf32> to vector<8x128xf32>
    %101 = vector.extract_strided_slice %99 {offsets = [0, 128], sizes = [8, 128], strides = [1, 1]} : vector<8x384xf32> to vector<8x128xf32>
    %102 = vector.extract_strided_slice %99 {offsets = [0, 256], sizes = [8, 128], strides = [1, 1]} : vector<8x384xf32> to vector<8x128xf32>
    %103 = vector.extract_strided_slice %93 {offsets = [0, 384], sizes = [8, 128], strides = [1, 1]} : vector<8x512xf32> to vector<8x128xf32>
    %104 = math.tanh %103 : vector<8x128xf32>
    %105 = arith.mulf %101, %82 : vector<8x128xf32>
    %106 = arith.mulf %100, %104 : vector<8x128xf32>
    %107 = arith.addf %105, %106 : vector<8x128xf32>
    %108 = math.tanh %107 : vector<8x128xf32>
    %109 = arith.mulf %102, %108 : vector<8x128xf32>
    %110 = arith.truncf %109 : vector<8x128xf32> to vector<8x128xbf16>
    %c3 = arith.constant 3 : index
    %c0_28 = arith.constant 0 : index
    %c0_29 = arith.constant 0 : index
    %111 = vector.load %arg7[%c3, %c0_28, %c0_29] : memref<8x8x128xbf16, #tpu.memory_space<vmem>>, vector<1x8x128xbf16>
    %112 = vector.shape_cast %111 : vector<1x8x128xbf16> to vector<8x128xbf16>
    %113 = vector.shape_cast %110 : vector<8x128xbf16> to vector<1x8x128xbf16>
    tpu.vector_store %arg7[%c3, %c0_28, %c0_29], %113 {strides = array<i32>} : memref<8x8x128xbf16, #tpu.memory_space<vmem>>, vector<1x8x128xbf16>,
    %114 = vector.extract_strided_slice %11 {offsets = [4, 0, 0], sizes = [1, 8, 512], strides = [1, 1, 1]} : vector<8x8x512xf32> to vector<1x8x512xf32>
    %115 = vector.shape_cast %114 : vector<1x8x512xf32> to vector<8x512xf32>
    %116 = arith.truncf %109 : vector<8x128xf32> to vector<8x128xbf16>
    %cst_30 = arith.constant dense<0.000000e+00> : vector<8x512xf32>
    %117 = tpu.matmul %116, %4, %cst_30 {dimension_numbers = #tpu.dot_dimension_numbers<[1], [0], [0], [1], [0, 0, 1, 1], [], []>} : vector<8x128xbf16>, vector<128x512xbf16>, vector<8x512xf32> -> vector<8x512xf32>
    %118 = arith.addf %115, %117 : vector<8x512xf32>
    %119 = vector.extract_strided_slice %118 {offsets = [0, 0], sizes = [8, 384], strides = [1, 1]} : vector<8x512xf32> to vector<8x384xf32>
    %120 = arith.negf %119 : vector<8x384xf32>
    %121 = math.exp %120 : vector<8x384xf32>
    %cst_31 = arith.constant 1.000000e+00 : f32
    %122 = vector.broadcast %cst_31 : f32 to vector<8x384xf32>
    %123 = arith.addf %122, %121 : vector<8x384xf32>
    %124 = arith.divf %122, %123 : vector<8x384xf32>
    %125 = vector.extract_strided_slice %124 {offsets = [0, 0], sizes = [8, 128], strides = [1, 1]} : vector<8x384xf32> to vector<8x128xf32>
    %126 = vector.extract_strided_slice %124 {offsets = [0, 128], sizes = [8, 128], strides = [1, 1]} : vector<8x384xf32> to vector<8x128xf32>
    %127 = vector.extract_strided_slice %124 {offsets = [0, 256], sizes = [8, 128], strides = [1, 1]} : vector<8x384xf32> to vector<8x128xf32>
    %128 = vector.extract_strided_slice %118 {offsets = [0, 384], sizes = [8, 128], strides = [1, 1]} : vector<8x512xf32> to vector<8x128xf32>
    %129 = math.tanh %128 : vector<8x128xf32>
    %130 = arith.mulf %126, %107 : vector<8x128xf32>
    %131 = arith.mulf %125, %129 : vector<8x128xf32>
    %132 = arith.addf %130, %131 : vector<8x128xf32>
    %133 = math.tanh %132 : vector<8x128xf32>
    %134 = arith.mulf %127, %133 : vector<8x128xf32>
    %135 = arith.truncf %134 : vector<8x128xf32> to vector<8x128xbf16>
    %c4 = arith.constant 4 : index
    %c0_32 = arith.constant 0 : index
    %c0_33 = arith.constant 0 : index
    %136 = vector.load %arg7[%c4, %c0_32, %c0_33] : memref<8x8x128xbf16, #tpu.memory_space<vmem>>, vector<1x8x128xbf16>
    %137 = vector.shape_cast %136 : vector<1x8x128xbf16> to vector<8x128xbf16>
    %138 = vector.shape_cast %135 : vector<8x128xbf16> to vector<1x8x128xbf16>
    tpu.vector_store %arg7[%c4, %c0_32, %c0_33], %138 {strides = array<i32>} : memref<8x8x128xbf16, #tpu.memory_space<vmem>>, vector<1x8x128xbf16>,
    %139 = vector.extract_strided_slice %11 {offsets = [5, 0, 0], sizes = [1, 8, 512], strides = [1, 1, 1]} : vector<8x8x512xf32> to vector<1x8x512xf32>
    %140 = vector.shape_cast %139 : vector<1x8x512xf32> to vector<8x512xf32>
    %141 = arith.truncf %134 : vector<8x128xf32> to vector<8x128xbf16>
    %cst_34 = arith.constant dense<0.000000e+00> : vector<8x512xf32>
    %142 = tpu.matmul %141, %4, %cst_34 {dimension_numbers = #tpu.dot_dimension_numbers<[1], [0], [0], [1], [0, 0, 1, 1], [], []>} : vector<8x128xbf16>, vector<128x512xbf16>, vector<8x512xf32> -> vector<8x512xf32>
    %143 = arith.addf %140, %142 : vector<8x512xf32>
    %144 = vector.extract_strided_slice %143 {offsets = [0, 0], sizes = [8, 384], strides = [1, 1]} : vector<8x512xf32> to vector<8x384xf32>
    %145 = arith.negf %144 : vector<8x384xf32>
    %146 = math.exp %145 : vector<8x384xf32>
    %cst_35 = arith.constant 1.000000e+00 : f32
    %147 = vector.broadcast %cst_35 : f32 to vector<8x384xf32>
    %148 = arith.addf %147, %146 : vector<8x384xf32>
    %149 = arith.divf %147, %148 : vector<8x384xf32>
    %150 = vector.extract_strided_slice %149 {offsets = [0, 0], sizes = [8, 128], strides = [1, 1]} : vector<8x384xf32> to vector<8x128xf32>
    %151 = vector.extract_strided_slice %149 {offsets = [0, 128], sizes = [8, 128], strides = [1, 1]} : vector<8x384xf32> to vector<8x128xf32>
    %152 = vector.extract_strided_slice %149 {offsets = [0, 256], sizes = [8, 128], strides = [1, 1]} : vector<8x384xf32> to vector<8x128xf32>
    %153 = vector.extract_strided_slice %143 {offsets = [0, 384], sizes = [8, 128], strides = [1, 1]} : vector<8x512xf32> to vector<8x128xf32>
    %154 = math.tanh %153 : vector<8x128xf32>
    %155 = arith.mulf %151, %132 : vector<8x128xf32>
    %156 = arith.mulf %150, %154 : vector<8x128xf32>
    %157 = arith.addf %155, %156 : vector<8x128xf32>
    %158 = math.tanh %157 : vector<8x128xf32>
    %159 = arith.mulf %152, %158 : vector<8x128xf32>
    %160 = arith.truncf %159 : vector<8x128xf32> to vector<8x128xbf16>
    %c5 = arith.constant 5 : index
    %c0_36 = arith.constant 0 : index
    %c0_37 = arith.constant 0 : index
    %161 = vector.load %arg7[%c5, %c0_36, %c0_37] : memref<8x8x128xbf16, #tpu.memory_space<vmem>>, vector<1x8x128xbf16>
    %162 = vector.shape_cast %161 : vector<1x8x128xbf16> to vector<8x128xbf16>
    %163 = vector.shape_cast %160 : vector<8x128xbf16> to vector<1x8x128xbf16>
    tpu.vector_store %arg7[%c5, %c0_36, %c0_37], %163 {strides = array<i32>} : memref<8x8x128xbf16, #tpu.memory_space<vmem>>, vector<1x8x128xbf16>,
    %164 = vector.extract_strided_slice %11 {offsets = [6, 0, 0], sizes = [1, 8, 512], strides = [1, 1, 1]} : vector<8x8x512xf32> to vector<1x8x512xf32>
    %165 = vector.shape_cast %164 : vector<1x8x512xf32> to vector<8x512xf32>
    %166 = arith.truncf %159 : vector<8x128xf32> to vector<8x128xbf16>
    %cst_38 = arith.constant dense<0.000000e+00> : vector<8x512xf32>
    %167 = tpu.matmul %166, %4, %cst_38 {dimension_numbers = #tpu.dot_dimension_numbers<[1], [0], [0], [1], [0, 0, 1, 1], [], []>} : vector<8x128xbf16>, vector<128x512xbf16>, vector<8x512xf32> -> vector<8x512xf32>
    %168 = arith.addf %165, %167 : vector<8x512xf32>
    %169 = vector.extract_strided_slice %168 {offsets = [0, 0], sizes = [8, 384], strides = [1, 1]} : vector<8x512xf32> to vector<8x384xf32>
    %170 = arith.negf %169 : vector<8x384xf32>
    %171 = math.exp %170 : vector<8x384xf32>
    %cst_39 = arith.constant 1.000000e+00 : f32
    %172 = vector.broadcast %cst_39 : f32 to vector<8x384xf32>
    %173 = arith.addf %172, %171 : vector<8x384xf32>
    %174 = arith.divf %172, %173 : vector<8x384xf32>
    %175 = vector.extract_strided_slice %174 {offsets = [0, 0], sizes = [8, 128], strides = [1, 1]} : vector<8x384xf32> to vector<8x128xf32>
    %176 = vector.extract_strided_slice %174 {offsets = [0, 128], sizes = [8, 128], strides = [1, 1]} : vector<8x384xf32> to vector<8x128xf32>
    %177 = vector.extract_strided_slice %174 {offsets = [0, 256], sizes = [8, 128], strides = [1, 1]} : vector<8x384xf32> to vector<8x128xf32>
    %178 = vector.extract_strided_slice %168 {offsets = [0, 384], sizes = [8, 128], strides = [1, 1]} : vector<8x512xf32> to vector<8x128xf32>
    %179 = math.tanh %178 : vector<8x128xf32>
    %180 = arith.mulf %176, %157 : vector<8x128xf32>
    %181 = arith.mulf %175, %179 : vector<8x128xf32>
    %182 = arith.addf %180, %181 : vector<8x128xf32>
    %183 = math.tanh %182 : vector<8x128xf32>
    %184 = arith.mulf %177, %183 : vector<8x128xf32>
    %185 = arith.truncf %184 : vector<8x128xf32> to vector<8x128xbf16>
    %c6 = arith.constant 6 : index
    %c0_40 = arith.constant 0 : index
    %c0_41 = arith.constant 0 : index
    %186 = vector.load %arg7[%c6, %c0_40, %c0_41] : memref<8x8x128xbf16, #tpu.memory_space<vmem>>, vector<1x8x128xbf16>
    %187 = vector.shape_cast %186 : vector<1x8x128xbf16> to vector<8x128xbf16>
    %188 = vector.shape_cast %185 : vector<8x128xbf16> to vector<1x8x128xbf16>
    tpu.vector_store %arg7[%c6, %c0_40, %c0_41], %188 {strides = array<i32>} : memref<8x8x128xbf16, #tpu.memory_space<vmem>>, vector<1x8x128xbf16>,
    %189 = vector.extract_strided_slice %11 {offsets = [7, 0, 0], sizes = [1, 8, 512], strides = [1, 1, 1]} : vector<8x8x512xf32> to vector<1x8x512xf32>
    %190 = vector.shape_cast %189 : vector<1x8x512xf32> to vector<8x512xf32>
    %191 = arith.truncf %184 : vector<8x128xf32> to vector<8x128xbf16>
    %cst_42 = arith.constant dense<0.000000e+00> : vector<8x512xf32>
    %192 = tpu.matmul %191, %4, %cst_42 {dimension_numbers = #tpu.dot_dimension_numbers<[1], [0], [0], [1], [0, 0, 1, 1], [], []>} : vector<8x128xbf16>, vector<128x512xbf16>, vector<8x512xf32> -> vector<8x512xf32>
    %193 = arith.addf %190, %192 : vector<8x512xf32>
    %194 = vector.extract_strided_slice %193 {offsets = [0, 0], sizes = [8, 384], strides = [1, 1]} : vector<8x512xf32> to vector<8x384xf32>
    %195 = arith.negf %194 : vector<8x384xf32>
    %196 = math.exp %195 : vector<8x384xf32>
    %cst_43 = arith.constant 1.000000e+00 : f32
    %197 = vector.broadcast %cst_43 : f32 to vector<8x384xf32>
    %198 = arith.addf %197, %196 : vector<8x384xf32>
    %199 = arith.divf %197, %198 : vector<8x384xf32>
    %200 = vector.extract_strided_slice %199 {offsets = [0, 0], sizes = [8, 128], strides = [1, 1]} : vector<8x384xf32> to vector<8x128xf32>
    %201 = vector.extract_strided_slice %199 {offsets = [0, 128], sizes = [8, 128], strides = [1, 1]} : vector<8x384xf32> to vector<8x128xf32>
    %202 = vector.extract_strided_slice %199 {offsets = [0, 256], sizes = [8, 128], strides = [1, 1]} : vector<8x384xf32> to vector<8x128xf32>
    %203 = vector.extract_strided_slice %193 {offsets = [0, 384], sizes = [8, 128], strides = [1, 1]} : vector<8x512xf32> to vector<8x128xf32>
    %204 = math.tanh %203 : vector<8x128xf32>
    %205 = arith.mulf %201, %182 : vector<8x128xf32>
    %206 = arith.mulf %200, %204 : vector<8x128xf32>
    %207 = arith.addf %205, %206 : vector<8x128xf32>
    %208 = math.tanh %207 : vector<8x128xf32>
    %209 = arith.mulf %202, %208 : vector<8x128xf32>
    %210 = arith.truncf %209 : vector<8x128xf32> to vector<8x128xbf16>
    %c7 = arith.constant 7 : index
    %c0_44 = arith.constant 0 : index
    %c0_45 = arith.constant 0 : index
    %211 = vector.load %arg7[%c7, %c0_44, %c0_45] : memref<8x8x128xbf16, #tpu.memory_space<vmem>>, vector<1x8x128xbf16>
    %212 = vector.shape_cast %211 : vector<1x8x128xbf16> to vector<8x128xbf16>
    %213 = vector.shape_cast %210 : vector<8x128xbf16> to vector<1x8x128xbf16>
    tpu.vector_store %arg7[%c7, %c0_44, %c0_45], %213 {strides = array<i32>} : memref<8x8x128xbf16, #tpu.memory_space<vmem>>, vector<1x8x128xbf16>,
    %c0_46 = arith.constant 0 : index
    %c0_47 = arith.constant 0 : index
    %214 = vector.load %arg10[%c0_46, %c0_47] : memref<8x128xf32, #tpu.memory_space<vmem>>, vector<8x128xf32>
    tpu.vector_store %arg10[%c0_46, %c0_47], %209 {strides = array<i32>} : memref<8x128xf32, #tpu.memory_space<vmem>>, vector<8x128xf32>,
    %c0_48 = arith.constant 0 : index
    %c0_49 = arith.constant 0 : index
    %215 = vector.load %arg11[%c0_48, %c0_49] : memref<8x128xf32, #tpu.memory_space<vmem>>, vector<8x128xf32>
    tpu.vector_store %arg11[%c0_48, %c0_49], %207 {strides = array<i32>} : memref<8x128xf32, #tpu.memory_space<vmem>>, vector<8x128xf32>,
    %c0_i32_50 = arith.constant 0 : i32
    %216 = arith.cmpi eq, %arg0, %c0_i32_50 : i32
    %217 = arith.extui %216 : i1 to i32
    %c0_i32_51 = arith.constant 0 : i32
    %218 = arith.cmpi ne, %217, %c0_i32_51 : i32
    scf.if %218 {
      %c0_52 = arith.constant 0 : index
      %c0_53 = arith.constant 0 : index
      %219 = vector.load %arg8[%c0_52, %c0_53] : memref<8x128xf32, #tpu.memory_space<vmem>>, vector<8x128xf32>
      tpu.vector_store %arg8[%c0_52, %c0_53], %209 {strides = array<i32>} : memref<8x128xf32, #tpu.memory_space<vmem>>, vector<8x128xf32>,
      %c0_54 = arith.constant 0 : index
      %c0_55 = arith.constant 0 : index
      %220 = vector.load %arg9[%c0_54, %c0_55] : memref<8x128xf32, #tpu.memory_space<vmem>>, vector<8x128xf32>
      tpu.vector_store %arg9[%c0_54, %c0_55], %207 {strides = array<i32>} : memref<8x128xf32, #tpu.memory_space<vmem>>, vector<8x128xf32>,
    } else {
    }
    return
  }
  func.func @transform_0(%arg0: i32) -> (i32, i32, i32) {
    %c0_i32 = arith.constant 0 : i32
    %c0_i32_0 = arith.constant 0 : i32
    %c0_i32_1 = arith.constant 0 : i32
    return %arg0, %c0_i32, %c0_i32_0 : i32, i32, i32
  }
  func.func @transform_1(%arg0: i32) -> (i32, i32) {
    %c0_i32 = arith.constant 0 : i32
    %c0_i32_0 = arith.constant 0 : i32
    %c0_i32_1 = arith.constant 0 : i32
    return %c0_i32, %c0_i32_0 : i32, i32
  }
  func.func @transform_2(%arg0: i32) -> (i32, i32) {
    %c0_i32 = arith.constant 0 : i32
    %c0_i32_0 = arith.constant 0 : i32
    %c0_i32_1 = arith.constant 0 : i32
    return %c0_i32, %c0_i32_0 : i32, i32
  }
  func.func @transform_3(%arg0: i32) -> (i32, i32) {
    %c0_i32 = arith.constant 0 : i32
    %c0_i32_0 = arith.constant 0 : i32
    %c0_i32_1 = arith.constant 0 : i32
    return %c0_i32, %c0_i32_0 : i32, i32
  }
  func.func @transform_4(%arg0: i32) -> (i32, i32) {
    %c0_i32 = arith.constant 0 : i32
    %c0_i32_0 = arith.constant 0 : i32
    %c0_i32_1 = arith.constant 0 : i32
    return %c0_i32, %c0_i32_0 : i32, i32
  }
  func.func @transform_5(%arg0: i32) -> (i32, i32) {
    %c0_i32 = arith.constant 0 : i32
    %c0_i32_0 = arith.constant 0 : i32
    %c0_i32_1 = arith.constant 0 : i32
    return %c0_i32, %c0_i32_0 : i32, i32
  }
  func.func @transform_6(%arg0: i32) -> (i32, i32, i32) {
    %c0_i32 = arith.constant 0 : i32
    %c0_i32_0 = arith.constant 0 : i32
    %c0_i32_1 = arith.constant 0 : i32
    return %arg0, %c0_i32, %c0_i32_0 : i32, i32, i32
  }
  func.func @transform_7(%arg0: i32) -> (i32, i32) {
    %c0_i32 = arith.constant 0 : i32
    %c0_i32_0 = arith.constant 0 : i32
    %c0_i32_1 = arith.constant 0 : i32
    return %c0_i32, %c0_i32_0 : i32, i32
  }
  func.func @transform_8(%arg0: i32) -> (i32, i32) {
    %c0_i32 = arith.constant 0 : i32
    %c0_i32_0 = arith.constant 0 : i32
    %c0_i32_1 = arith.constant 0 : i32
    return %c0_i32, %c0_i32_0 : i32, i32
  }
}

</mosaic_0001>

<llo_original>
// kernel: tpu_custom_call.1
$region0: #{tpu_custom_call.1}
  #allocation0 [shape = 'u32[]', space=smem, size = 0x4, offset = 0x4, fixed_abs, tag = 'smem constant byte address 0x4 - core index']
  #allocation1 [shape = 'u32[144,128]{1,0:T(1,128)}', space=vmem, size = 0x12000, scoped, tag = 'internal scratch']
  #allocation2 [shape = 'f32[8,128]{1,0:T(8,128)}', space=vmem, size = 0x1000, scoped, tag = 'scratch operand']
  #allocation3 [shape = 'f32[8,128]{1,0:T(8,128)}', space=vmem, size = 0x1000, scoped, tag = 'scratch operand']
  %s0 = inlined_call_operand.hbm [shape: bf16[8,8,32], index: 0, kind: input, shape index: {}]
  %s1 = inlined_call_operand.hbm [shape: bf16[32,512], index: 1, kind: input, shape index: {}]
  %s2 = inlined_call_operand.hbm [shape: bf16[128,512], index: 2, kind: input, shape index: {}]
  %s3 = inlined_call_operand.hbm [shape: f32[1,512], index: 3, kind: input, shape index: {}]
  %s4 = inlined_call_operand.vmem [shape: f32[8,128], index: 4, kind: input, shape index: {}]
  %s5 = inlined_call_operand.vmem [shape: f32[8,128], index: 5, kind: input, shape index: {}]
  %s6 = inlined_call_operand.hbm [shape: bf16[8,8,128], index: 6, kind: output, shape index: {0}]
  %s7 = inlined_call_operand.hbm [shape: f32[8,128], index: 7, kind: output, shape index: {1}]
  %s8 = inlined_call_operand.hbm [shape: f32[8,128], index: 8, kind: output, shape index: {2}]
  %9 = xla_tuple %s6, %s7, %s8
  %s10 = sld [smem:[#allocation0]]
  $region74: #{tpu_custom_call.1} parent=0
    _
  %s12 = ssub.s32 1, %s10
  %s13 = scalar_select 0, %s12, %s10
  $region1: #{tpu_custom_call.1} parent=0
    #allocation4 [shape = 'u8[16384]{0}', space=vmem, size = 0x4000, scoped, tag = 'input window, operand 0, single buffered']
    #allocation5 [shape = 's32[1]{0}', space=sflag, size = 0x4, scoped, tag = 'scoped memory for tpu_custom_call.1']
    #allocation6 [shape = 's32[1]{0}', space=sflag, size = 0x4, scoped, tag = 'scoped memory for tpu_custom_call.1']
    #allocation7 [shape = 'u8[32768]{0}', space=vmem, size = 0x8000, scoped, tag = 'input window, operand 1, single buffered']
    #allocation8 [shape = 's32[1]{0}', space=sflag, size = 0x4, scoped, tag = 'scoped memory for tpu_custom_call.1']
    #allocation9 [shape = 'u8[131072]{0}', space=vmem, size = 0x20000, scoped, tag = 'input window, operand 2, single buffered']
    #allocation10 [shape = 'u8[2048]{0}', space=vmem, size = 0x800, scoped, tag = 'input window, operand 3, single buffered']
    #allocation11 [shape = 's32[1]{0}', space=sflag, size = 0x4, scoped, tag = 'scoped memory for tpu_custom_call.1']
    #allocation12 [shape = 'u8[16384]{0}', space=vmem, size = 0x4000, scoped, tag = 'output window, operand 0, single buffered']
    #allocation13 [shape = 'u8[4096]{0}', space=vmem, size = 0x1000, scoped, tag = 'output window, operand 1, single buffered']
    #allocation14 [shape = 's32[1]{0}', space=sflag, size = 0x4, scoped, tag = 'scoped memory for tpu_custom_call.1']
    #allocation15 [shape = 'u8[4096]{0}', space=vmem, size = 0x1000, scoped, tag = 'output window, operand 2, single buffered']
    %14 = vsyncpa [#allocation5], 0
    %15 = vsyncpa [#allocation8], 0
    %16 = vsyncpa [#allocation11], 0
    %17 = vsyncpa [#allocation6], 0
    %18 = vsyncpa [#allocation14], 0
    // Predicated region
    $region2: #{tpu_custom_call.1} parent=1 // pred_check
      _
    $region3: #{tpu_custom_call.1} parent=1 // pred_check_branch
      %20 = sbr.rel (0) target = $region5
    $region4: #{tpu_custom_call.1} parent=1 // pred_region
      %s22 = ssub.s32 512, 512
      %23 = vsyncadd [#allocation5], %s22
      %s24 = sshll.u32 [#allocation4], 4
      %s25 = int_to_ptr.vmem [resolvable:$true] %s24
      %30 = dma.hbm_to_vmem [thread:$0]  %s0, 512, %s25, [#allocation5], 64, 64, 4
    $region5: #{tpu_custom_call.1} parent=1 // pred_fallthru
      _
    // Predicated region
    $region6: #{tpu_custom_call.1} parent=1 // pred_check
      _
    $region7: #{tpu_custom_call.1} parent=1 // pred_check_branch
      %32 = sbr.rel (0) target = $region9
    $region8: #{tpu_custom_call.1} parent=1 // pred_region
      %s34 = ssub.s32 1024, 1024
      %35 = vsyncadd [#allocation8], %s34
      %s36 = sshll.u32 [#allocation7], 4
      %s37 = int_to_ptr.vmem [resolvable:$true] %s36
      %42 = dma.hbm_to_vmem [thread:$0]  %s1, 1024, %s37, [#allocation8], 256, 256, 16
    $region9: #{tpu_custom_call.1} parent=1 // pred_fallthru
      _
    // Predicated region
    $region10: #{tpu_custom_call.1} parent=1 // pred_check
      _
    $region11: #{tpu_custom_call.1} parent=1 // pred_check_branch
      %44 = sbr.rel (0) target = $region13
    $region12: #{tpu_custom_call.1} parent=1 // pred_region
      %s46 = ssub.s32 4096, 4096
      %47 = vsyncadd [#allocation8], %s46
      %s48 = sshll.u32 [#allocation9], 4
      %s49 = int_to_ptr.vmem [resolvable:$true] %s48
      %54 = dma.hbm_to_vmem [thread:$0]  %s2, 4096, %s49, [#allocation8], 256, 256, 16
    $region13: #{tpu_custom_call.1} parent=1 // pred_fallthru
      _
    // Predicated region
    $region14: #{tpu_custom_call.1} parent=1 // pred_check
      _
    $region15: #{tpu_custom_call.1} parent=1 // pred_check_branch
      %56 = sbr.rel (0) target = $region17
    $region16: #{tpu_custom_call.1} parent=1 // pred_region
      %s58 = ssub.s32 64, 64
      %59 = vsyncadd [#allocation11], %s58
      %s61 = sshll.u32 [#allocation10], 4
      %s62 = int_to_ptr.vmem [resolvable:$true] %s61
      %64 = dma.hbm_to_vmem [thread:$0]  %s3, 64, %s62, [#allocation11]
    $region17: #{tpu_custom_call.1} parent=1 // pred_fallthru
      _
    // Predicated region
    $region18: #{tpu_custom_call.1} parent=1 // pred_check
      _
    $region19: #{tpu_custom_call.1} parent=1 // pred_check_branch
      %66 = sbr.rel (0) target = $region21
    $region20: #{tpu_custom_call.1} parent=1 // pred_region
      _
    $region21: #{tpu_custom_call.1} parent=1 // pred_fallthru
      _
    // Predicated region
    $region22: #{tpu_custom_call.1} parent=1 // pred_check
      _
    $region23: #{tpu_custom_call.1} parent=1 // pred_check_branch
      %68 = sbr.rel (0) target = $region25
    $region24: #{tpu_custom_call.1} parent=1 // pred_region
      _
    $region25: #{tpu_custom_call.1} parent=1 // pred_fallthru
      _
    // Predicated region
    $region26: #{tpu_custom_call.1} parent=1 // pred_check
      _
    $region27: #{tpu_custom_call.1} parent=1 // pred_check_branch
      %70 = sbr.rel (0) target = $region29
    $region28: #{tpu_custom_call.1} parent=1 // pred_region
      %71 = dma.done [#allocation5], 512
    $region29: #{tpu_custom_call.1} parent=1 // pred_fallthru
      _
    // Predicated region
    $region30: #{tpu_custom_call.1} parent=1 // pred_check
      _
    $region31: #{tpu_custom_call.1} parent=1 // pred_check_branch
      %73 = sbr.rel (0) target = $region33
    $region32: #{tpu_custom_call.1} parent=1 // pred_region
      %74 = dma.done [#allocation8], 1024
    $region33: #{tpu_custom_call.1} parent=1 // pred_fallthru
      _
    // Predicated region
    $region34: #{tpu_custom_call.1} parent=1 // pred_check
      _
    $region35: #{tpu_custom_call.1} parent=1 // pred_check_branch
      %76 = sbr.rel (0) target = $region37
    $region36: #{tpu_custom_call.1} parent=1 // pred_region
      %77 = dma.done [#allocation8], 4096
    $region37: #{tpu_custom_call.1} parent=1 // pred_fallthru
      _
    // Predicated region
    $region38: #{tpu_custom_call.1} parent=1 // pred_check
      _
    $region39: #{tpu_custom_call.1} parent=1 // pred_check_branch
      %79 = sbr.rel (0) target = $region41
    $region40: #{tpu_custom_call.1} parent=1 // pred_region
      %80 = dma.done [#allocation11], 64
    $region41: #{tpu_custom_call.1} parent=1 // pred_fallthru
      _
    %p82 = scmp.eq.s32.totalorder 0, 0
    // Predicated region
    $region42: #{tpu_custom_call.1} parent=1 // pred_check
      %p83 = pneg %p82
    $region43: #{tpu_custom_call.1} parent=1 // pred_check_branch
      %85 = sbr.rel (%p83) target = $region45
    $region44: #{tpu_custom_call.1} parent=1 // pred_region
      %v86 = vld [vmem:[%s4] sm:$0xff]
      %87 = vst [vmem:[#allocation2] sm:$0xff] %v86
      %v88 = vld [vmem:[%s5] sm:$0xff]
      %89 = vst [vmem:[#allocation3] sm:$0xff] %v88
    $region45: #{tpu_custom_call.1} parent=1 // pred_fallthru
      _
    %v90 = vld [vmem:[#allocation7] sm:$0xff]
    %v91 = vld [vmem:[#allocation7 + $0x8] sm:$0xff]
    %v92 = vld [vmem:[#allocation7 + $0x10] sm:$0xff]
    %v93 = vld [vmem:[#allocation7 + $0x18] sm:$0xff]
    %v94 = vld [vmem:[#allocation7 + $0x20] sm:$0xff]
    %v95 = vld [vmem:[#allocation7 + $0x28] sm:$0xff]
    %v96 = vld [vmem:[#allocation7 + $0x30] sm:$0xff]
    %v97 = vld [vmem:[#allocation7 + $0x38] sm:$0xff]
    %v98 = vld [vmem:[#allocation9] sm:$0xff]
    %v99 = vld [vmem:[#allocation9 + $0x8] sm:$0xff]
    %v100 = vld [vmem:[#allocation9 + $0x10] sm:$0xff]
    %v101 = vld [vmem:[#allocation9 + $0x18] sm:$0xff]
    %v102 = vld [vmem:[#allocation9 + $0x20] sm:$0xff]
    %v103 = vld [vmem:[#allocation9 + $0x28] sm:$0xff]
    %v104 = vld [vmem:[#allocation9 + $0x30] sm:$0xff]
    %v105 = vld [vmem:[#allocation9 + $0x38] sm:$0xff]
    %v106 = vld [vmem:[#allocation9 + $0x40] sm:$0xff]
    %v107 = vld [vmem:[#allocation9 + $0x48] sm:$0xff]
    %v108 = vld [vmem:[#allocation9 + $0x50] sm:$0xff]
    %v109 = vld [vmem:[#allocation9 + $0x58] sm:$0xff]
    %v110 = vld [vmem:[#allocation9 + $0x60] sm:$0xff]
    %v111 = vld [vmem:[#allocation9 + $0x68] sm:$0xff]
    %v112 = vld [vmem:[#allocation9 + $0x70] sm:$0xff]
    %v113 = vld [vmem:[#allocation9 + $0x78] sm:$0xff]
    %v114 = vld [vmem:[#allocation9 + $0x80] sm:$0xff]
    %v115 = vld [vmem:[#allocation9 + $0x88] sm:$0xff]
    %v116 = vld [vmem:[#allocation9 + $0x90] sm:$0xff]
    %v117 = vld [vmem:[#allocation9 + $0x98] sm:$0xff]
    %v118 = vld [vmem:[#allocation9 + $0xa0] sm:$0xff]
    %v119 = vld [vmem:[#allocation9 + $0xa8] sm:$0xff]
    %v120 = vld [vmem:[#allocation9 + $0xb0] sm:$0xff]
    %v121 = vld [vmem:[#allocation9 + $0xb8] sm:$0xff]
    %v122 = vld [vmem:[#allocation9 + $0xc0] sm:$0xff]
    %v123 = vld [vmem:[#allocation9 + $0xc8] sm:$0xff]
    %v124 = vld [vmem:[#allocation9 + $0xd0] sm:$0xff]
    %v125 = vld [vmem:[#allocation9 + $0xd8] sm:$0xff]
    %v126 = vld [vmem:[#allocation9 + $0xe0] sm:$0xff]
    %v127 = vld [vmem:[#allocation9 + $0xe8] sm:$0xff]
    %v128 = vld [vmem:[#allocation9 + $0xf0] sm:$0xff]
    %v129 = vld [vmem:[#allocation9 + $0xf8] sm:$0xff]
    %v130 = vld [vmem:[#allocation4] sm:$0xf]
    %v131 = vld [vmem:[#allocation4 + $0x4] sm:$0xf]
    %v132 = vld [vmem:[#allocation4 + $0x8] sm:$0xf]
    %v133 = vld [vmem:[#allocation4 + $0xc] sm:$0xf]
    %v134 = vld [vmem:[#allocation4 + $0x10] sm:$0xf]
    %v135 = vld [vmem:[#allocation4 + $0x14] sm:$0xf]
    %v136 = vld [vmem:[#allocation4 + $0x18] sm:$0xf]
    %v137 = vld [vmem:[#allocation4 + $0x1c] sm:$0xf]
    %v138 = vld [vmem:[#allocation10] sm:$0xf]
    %v140 = vlaneseq
    %v141 = vshrl.u32 %v140, 7
    %v142 = vsub.s32 0, %v141
    %v143 = vrot.slane %v138, %v142
    %v144 = vlaneseq
    %v145 = vshrl.u32 %v144, 7
    %v146 = vsub.s32 1, %v145
    %v147 = vrot.slane %v138, %v146
    %v148 = vlaneseq
    %v149 = vshrl.u32 %v148, 7
    %v150 = vsub.s32 2, %v149
    %v151 = vrot.slane %v138, %v150
    %v152 = vlaneseq
    %v153 = vshrl.u32 %v152, 7
    %v154 = vsub.s32 3, %v153
    %v155 = vrot.slane %v138, %v154
    %v168 = vunpack.c.l.b16 %v130
    %v169 = vunpack.c.l.b16 %v131
    %v170 = vunpack.c.l.b16 %v132
    %v171 = vunpack.c.l.b16 %v133
    %v172 = vunpack.c.l.b16 %v134
    %v173 = vunpack.c.l.b16 %v135
    %v174 = vunpack.c.l.b16 %v136
    %v175 = vunpack.c.l.b16 %v137
    %v176 = vpack.c.b16 %v169, %v168
    %v177 = vpack.c.b16 %v171, %v170
    %v178 = vpack.c.b16 %v173, %v172
    %v179 = vpack.c.b16 %v175, %v174
    %v188 = vunpack.c.l.b16 %v90
    %v189 = vunpack.c.h.b16 %v90
    %v190 = vunpack.c.l.b16 %v91
    %v191 = vunpack.c.h.b16 %v91
    %v192 = vunpack.c.l.b16 %v92
    %v193 = vunpack.c.h.b16 %v92
    %v194 = vunpack.c.l.b16 %v93
    %v195 = vunpack.c.h.b16 %v93
    %v196 = vunpack.c.l.b16 %v94
    %v197 = vunpack.c.h.b16 %v94
    %v198 = vunpack.c.l.b16 %v95
    %v199 = vunpack.c.h.b16 %v95
    %v200 = vunpack.c.l.b16 %v96
    %v201 = vunpack.c.h.b16 %v96
    %v202 = vunpack.c.l.b16 %v97
    %v203 = vunpack.c.h.b16 %v97
    %v204 = vpack.c.b16 %v192, %v188
    %v205 = vpack.c.b16 %v193, %v189
    %v206 = vpack.c.b16 %v194, %v190
    %v207 = vpack.c.b16 %v195, %v191
    %v208 = vpack.c.b16 %v200, %v196
    %v209 = vpack.c.b16 %v201, %v197
    %v210 = vpack.c.b16 %v202, %v198
    %v211 = vpack.c.b16 %v203, %v199
    %vm220 = vcmask 261120
    %v222 = vsel %vm220, %v176, 0
    %v225 = vsel %vm220, %v177, 0
    %v228 = vsel %vm220, %v178, 0
    %v231 = vsel %vm220, %v179, 0
    %233 = vmatprep.subr.bf16.mxu0 %v205
    %234 = vmatpush1.bf16.msra.mxu0 %v204
    %235 = vmatprep.subr.bf16.mxu0 %v209
    %236 = vmatpush1.bf16.msra.mxu0 %v208
    %237 = vmatprep.subr.bf16.mxu0 0
    %238 = vmatpush1.bf16.msra.mxu0 0
    %239 = vmatprep.subr.bf16.mxu0 0
    %240 = vmatpush1.bf16.msra.mxu0 0
    %241 = vmatprep.subr.bf16.mxu0 0
    %242 = vmatpush1.bf16.msra.mxu0 0
    %243 = vmatprep.subr.bf16.mxu0 0
    %244 = vmatpush1.bf16.msra.mxu0 0
    %245 = vmatprep.subr.bf16.mxu0 0
    %246 = vmatpush1.bf16.msra.mxu0 0
    %247 = vmatprep.subr.bf16.mxu0 0
    %248 = vmatpush1.bf16.msra.mxu0 0
    %249 = vmatprep.subr.bf16.mxu0 0
    %250 = vmatpush1.bf16.msra.mxu0 0
    %251 = vmatprep.subr.bf16.mxu0 0
    %252 = vmatpush1.bf16.msra.mxu0 0
    %253 = vmatprep.subr.bf16.mxu0 0
    %254 = vmatpush1.bf16.msra.mxu0 0
    %255 = vmatprep.subr.bf16.mxu0 0
    %256 = vmatpush1.bf16.msra.mxu0 0
    %257 = vmatprep.subr.bf16.mxu0 0
    %258 = vmatpush1.bf16.msra.mxu0 0
    %259 = vmatprep.subr.bf16.mxu0 0
    %260 = vmatpush1.bf16.msra.mxu0 0
    %261 = vmatprep.subr.bf16.mxu0 0
    %262 = vmatpush1.bf16.msra.mxu0 0
    %263 = vmatprep.subr.bf16.mxu0 0
    %264 = vmatpush1.bf16.msra.mxu0 0
    %265 = vmatprep.mubr.bf16.mxu0 0
    %266 = vmatmul.mubr.bf16.gmra.mrb[0].mxu0 %v222
    %v267 = vpop.f32.mrb[0].mxu0
    %v268 = vadd.f32 %v143, %v267
    %v269 = vpop.f32.mrb[0].mxu0
    %v270 = vadd.f32 %v147, %v269
    %v271 = vpop.f32.mrb[0].mxu0
    %v272 = vadd.f32 %v143, %v271
    %v273 = vpop.f32.mrb[0].mxu0
    %v274 = vadd.f32 %v147, %v273
    %275 = vmatprep.mubr.bf16.mxu0 0
    %276 = vmatmul.mubr.bf16.gmra.mrb[0].mxu0 %v225
    %v277 = vpop.f32.mrb[0].mxu0
    %v278 = vadd.f32 %v143, %v277
    %v279 = vpop.f32.mrb[0].mxu0
    %v280 = vadd.f32 %v147, %v279
    %v281 = vpop.f32.mrb[0].mxu0
    %v282 = vadd.f32 %v143, %v281
    %v283 = vpop.f32.mrb[0].mxu0
    %v284 = vadd.f32 %v147, %v283
    %285 = vmatprep.mubr.bf16.mxu0 0
    %286 = vmatmul.mubr.bf16.gmra.mrb[0].mxu0 %v228
    %v287 = vpop.f32.mrb[0].mxu0
    %v288 = vadd.f32 %v143, %v287
    %v289 = vpop.f32.mrb[0].mxu0
    %v290 = vadd.f32 %v147, %v289
    %v291 = vpop.f32.mrb[0].mxu0
    %v292 = vadd.f32 %v143, %v291
    %v293 = vpop.f32.mrb[0].mxu0
    %v294 = vadd.f32 %v147, %v293
    %295 = vmatprep.mubr.bf16.mxu0 0
    %296 = vmatmul.mubr.bf16.gmra.mrb[0].mxu0 %v231
    %v297 = vpop.f32.mrb[0].mxu0
    %v298 = vadd.f32 %v143, %v297
    %v299 = vpop.f32.mrb[0].mxu0
    %v300 = vadd.f32 %v147, %v299
    %v301 = vpop.f32.mrb[0].mxu0
    %v302 = vadd.f32 %v143, %v301
    %v303 = vpop.f32.mrb[0].mxu0
    %v304 = vadd.f32 %v147, %v303
    %305 = vdwg.mxu0
    %306 = vmatprep.subr.bf16.mxu0 %v207
    %307 = vmatpush1.bf16.msra.mxu0 %v206
    %308 = vmatprep.subr.bf16.mxu0 %v211
    %309 = vmatpush1.bf16.msra.mxu0 %v210
    %310 = vmatprep.subr.bf16.mxu0 0
    %311 = vmatpush1.bf16.msra.mxu0 0
    %312 = vmatprep.subr.bf16.mxu0 0
    %313 = vmatpush1.bf16.msra.mxu0 0
    %314 = vmatprep.subr.bf16.mxu0 0
    %315 = vmatpush1.bf16.msra.mxu0 0
    %316 = vmatprep.subr.bf16.mxu0 0
    %317 = vmatpush1.bf16.msra.mxu0 0
    %318 = vmatprep.subr.bf16.mxu0 0
    %319 = vmatpush1.bf16.msra.mxu0 0
    %320 = vmatprep.subr.bf16.mxu0 0
    %321 = vmatpush1.bf16.msra.mxu0 0
    %322 = vmatprep.subr.bf16.mxu0 0
    %323 = vmatpush1.bf16.msra.mxu0 0
    %324 = vmatprep.subr.bf16.mxu0 0
    %325 = vmatpush1.bf16.msra.mxu0 0
    %326 = vmatprep.subr.bf16.mxu0 0
    %327 = vmatpush1.bf16.msra.mxu0 0
    %328 = vmatprep.subr.bf16.mxu0 0
    %329 = vmatpush1.bf16.msra.mxu0 0
    %330 = vmatprep.subr.bf16.mxu0 0
    %331 = vmatpush1.bf16.msra.mxu0 0
    %332 = vmatprep.subr.bf16.mxu0 0
    %333 = vmatpush1.bf16.msra.mxu0 0
    %334 = vmatprep.subr.bf16.mxu0 0
    %335 = vmatpush1.bf16.msra.mxu0 0
    %336 = vmatprep.subr.bf16.mxu0 0
    %337 = vmatpush1.bf16.msra.mxu0 0
    %338 = vmatprep.mubr.bf16.mxu0 0
    %339 = vmatmul.mubr.bf16.gmra.mrb[0].mxu0 %v222
    %v340 = vpop.f32.mrb[0].mxu0
    %v341 = vadd.f32 %v151, %v340
    %v342 = vpop.f32.mrb[0].mxu0
    %v343 = vadd.f32 %v155, %v342
    %v344 = vpop.f32.mrb[0].mxu0
    %v345 = vadd.f32 %v151, %v344
    %v346 = vpop.f32.mrb[0].mxu0
    %v347 = vadd.f32 %v155, %v346
    %348 = vmatprep.mubr.bf16.mxu0 0
    %349 = vmatmul.mubr.bf16.gmra.mrb[0].mxu0 %v225
    %v350 = vpop.f32.mrb[0].mxu0
    %v351 = vadd.f32 %v151, %v350
    %v352 = vpop.f32.mrb[0].mxu0
    %v353 = vadd.f32 %v155, %v352
    %v354 = vpop.f32.mrb[0].mxu0
    %v355 = vadd.f32 %v151, %v354
    %v356 = vpop.f32.mrb[0].mxu0
    %v357 = vadd.f32 %v155, %v356
    %358 = vmatprep.mubr.bf16.mxu0 0
    %359 = vmatmul.mubr.bf16.gmra.mrb[0].mxu0 %v228
    %v360 = vpop.f32.mrb[0].mxu0
    %v361 = vadd.f32 %v151, %v360
    %v362 = vpop.f32.mrb[0].mxu0
    %v363 = vadd.f32 %v155, %v362
    %v364 = vpop.f32.mrb[0].mxu0
    %v365 = vadd.f32 %v151, %v364
    %v366 = vpop.f32.mrb[0].mxu0
    %v367 = vadd.f32 %v155, %v366
    %368 = vmatprep.mubr.bf16.mxu0 0
    %369 = vmatmul.mubr.bf16.gmra.mrb[0].mxu0 %v231
    %v370 = vpop.f32.mrb[0].mxu0
    %v371 = vadd.f32 %v151, %v370
    %v372 = vpop.f32.mrb[0].mxu0
    %v373 = vadd.f32 %v155, %v372
    %v374 = vpop.f32.mrb[0].mxu0
    %v375 = vadd.f32 %v151, %v374
    %v376 = vpop.f32.mrb[0].mxu0
    %v377 = vadd.f32 %v155, %v376
    %378 = vdwg.mxu0
    %v379 = vld [vmem:[#allocation2] sm:$0xff]
    %v380 = vld [vmem:[#allocation3] sm:$0xff]
    %v381 = vpack.c.bf16 %v379, %v379
    %v414 = vunpack.c.l.b16 %v98
    %v415 = vunpack.c.h.b16 %v98
    %v416 = vunpack.c.l.b16 %v99
    %v417 = vunpack.c.h.b16 %v99
    %v418 = vunpack.c.l.b16 %v100
    %v419 = vunpack.c.h.b16 %v100
    %v420 = vunpack.c.l.b16 %v101
    %v421 = vunpack.c.h.b16 %v101
    %v422 = vunpack.c.l.b16 %v102
    %v423 = vunpack.c.h.b16 %v102
    %v424 = vunpack.c.l.b16 %v103
    %v425 = vunpack.c.h.b16 %v103
    %v426 = vunpack.c.l.b16 %v104
    %v427 = vunpack.c.h.b16 %v104
    %v428 = vunpack.c.l.b16 %v105
    %v429 = vunpack.c.h.b16 %v105
    %v430 = vunpack.c.l.b16 %v106
    %v431 = vunpack.c.h.b16 %v106
    %v432 = vunpack.c.l.b16 %v107
    %v433 = vunpack.c.h.b16 %v107
    %v434 = vunpack.c.l.b16 %v108
    %v435 = vunpack.c.h.b16 %v108
    %v436 = vunpack.c.l.b16 %v109
    %v437 = vunpack.c.h.b16 %v109
    %v438 = vunpack.c.l.b16 %v110
    %v439 = vunpack.c.h.b16 %v110
    %v440 = vunpack.c.l.b16 %v111
    %v441 = vunpack.c.h.b16 %v111
    %v442 = vunpack.c.l.b16 %v112
    %v443 = vunpack.c.h.b16 %v112
    %v444 = vunpack.c.l.b16 %v113
    %v445 = vunpack.c.h.b16 %v113
    %v446 = vunpack.c.l.b16 %v114
    %v447 = vunpack.c.h.b16 %v114
    %v448 = vunpack.c.l.b16 %v115
    %v449 = vunpack.c.h.b16 %v115
    %v450 = vunpack.c.l.b16 %v116
    %v451 = vunpack.c.h.b16 %v116
    %v452 = vunpack.c.l.b16 %v117
    %v453 = vunpack.c.h.b16 %v117
    %v454 = vunpack.c.l.b16 %v118
    %v455 = vunpack.c.h.b16 %v118
    %v456 = vunpack.c.l.b16 %v119
    %v457 = vunpack.c.h.b16 %v119
    %v458 = vunpack.c.l.b16 %v120
    %v459 = vunpack.c.h.b16 %v120
    %v460 = vunpack.c.l.b16 %v121
    %v461 = vunpack.c.h.b16 %v121
    %v462 = vunpack.c.l.b16 %v122
    %v463 = vunpack.c.h.b16 %v122
    %v464 = vunpack.c.l.b16 %v123
    %v465 = vunpack.c.h.b16 %v123
    %v466 = vunpack.c.l.b16 %v124
    %v467 = vunpack.c.h.b16 %v124
    %v468 = vunpack.c.l.b16 %v125
    %v469 = vunpack.c.h.b16 %v125
    %v470 = vunpack.c.l.b16 %v126
    %v471 = vunpack.c.h.b16 %v126
    %v472 = vunpack.c.l.b16 %v127
    %v473 = vunpack.c.h.b16 %v127
    %v474 = vunpack.c.l.b16 %v128
    %v475 = vunpack.c.h.b16 %v128
    %v476 = vunpack.c.l.b16 %v129
    %v477 = vunpack.c.h.b16 %v129
    %v478 = vpack.c.b16 %v418, %v414
    %v479 = vpack.c.b16 %v419, %v415
    %v480 = vpack.c.b16 %v420, %v416
    %v481 = vpack.c.b16 %v421, %v417
    %v482 = vpack.c.b16 %v426, %v422
    %v483 = vpack.c.b16 %v427, %v423
    %v484 = vpack.c.b16 %v428, %v424
    %v485 = vpack.c.b16 %v429, %v425
    %v486 = vpack.c.b16 %v434, %v430
    %v487 = vpack.c.b16 %v435, %v431
    %v488 = vpack.c.b16 %v436, %v432
    %v489 = vpack.c.b16 %v437, %v433
    %v490 = vpack.c.b16 %v442, %v438
    %v491 = vpack.c.b16 %v443, %v439
    %v492 = vpack.c.b16 %v444, %v440
    %v493 = vpack.c.b16 %v445, %v441
    %v494 = vpack.c.b16 %v450, %v446
    %v495 = vpack.c.b16 %v451, %v447
    %v496 = vpack.c.b16 %v452, %v448
    %v497 = vpack.c.b16 %v453, %v449
    %v498 = vpack.c.b16 %v458, %v454
    %v499 = vpack.c.b16 %v459, %v455
    %v500 = vpack.c.b16 %v460, %v456
    %v501 = vpack.c.b16 %v461, %v457
    %v502 = vpack.c.b16 %v466, %v462
    %v503 = vpack.c.b16 %v467, %v463
    %v504 = vpack.c.b16 %v468, %v464
    %v505 = vpack.c.b16 %v469, %v465
    %v506 = vpack.c.b16 %v474, %v470
    %v507 = vpack.c.b16 %v475, %v471
    %v508 = vpack.c.b16 %v476, %v472
    %v509 = vpack.c.b16 %v477, %v473
    %542 = vmatprep.subr.bf16.mxu0 %v479
    %543 = vmatpush1.bf16.msra.mxu0 %v478
    %544 = vmatprep.subr.bf16.mxu0 %v483
    %545 = vmatpush1.bf16.msra.mxu0 %v482
    %546 = vmatprep.subr.bf16.mxu0 %v487
    %547 = vmatpush1.bf16.msra.mxu0 %v486
    %548 = vmatprep.subr.bf16.mxu0 %v491
    %549 = vmatpush1.bf16.msra.mxu0 %v490
    %550 = vmatprep.subr.bf16.mxu0 %v495
    %551 = vmatpush1.bf16.msra.mxu0 %v494
    %552 = vmatprep.subr.bf16.mxu0 %v499
    %553 = vmatpush1.bf16.msra.mxu0 %v498
    %554 = vmatprep.subr.bf16.mxu0 %v503
    %555 = vmatpush1.bf16.msra.mxu0 %v502
    %556 = vmatprep.subr.bf16.mxu0 %v507
    %557 = vmatpush1.bf16.msra.mxu0 %v506
    %558 = vmatprep.subr.bf16.mxu0 0
    %559 = vmatpush1.bf16.msra.mxu0 0
    %560 = vmatprep.subr.bf16.mxu0 0
    %561 = vmatpush1.bf16.msra.mxu0 0
    %562 = vmatprep.subr.bf16.mxu0 0
    %563 = vmatpush1.bf16.msra.mxu0 0
    %564 = vmatprep.subr.bf16.mxu0 0
    %565 = vmatpush1.bf16.msra.mxu0 0
    %566 = vmatprep.subr.bf16.mxu0 0
    %567 = vmatpush1.bf16.msra.mxu0 0
    %568 = vmatprep.subr.bf16.mxu0 0
    %569 = vmatpush1.bf16.msra.mxu0 0
    %570 = vmatprep.subr.bf16.mxu0 0
    %571 = vmatpush1.bf16.msra.mxu0 0
    %572 = vmatprep.subr.bf16.mxu0 0
    %573 = vmatpush1.bf16.msra.mxu0 0
    %574 = vmatprep.mubr.bf16.mxu0 0
    %575 = vmatmul.mubr.bf16.gmra.mrb[0].mxu0 %v381
    %v576 = vpop.f32.mrb[0].mxu0
    %v577 = vadd.f32 0.0, %v576
    %v578 = vpop.f32.mrb[0].mxu0
    %v579 = vadd.f32 0.0, %v578
    %v580 = vpop.f32.mrb[0].mxu0
    %v581 = vpop.f32.mrb[0].mxu0
    %582 = vdwg.mxu0
    %583 = vmatprep.subr.bf16.mxu0 %v481
    %584 = vmatpush1.bf16.msra.mxu0 %v480
    %585 = vmatprep.subr.bf16.mxu0 %v485
    %586 = vmatpush1.bf16.msra.mxu0 %v484
    %587 = vmatprep.subr.bf16.mxu0 %v489
    %588 = vmatpush1.bf16.msra.mxu0 %v488
    %589 = vmatprep.subr.bf16.mxu0 %v493
    %590 = vmatpush1.bf16.msra.mxu0 %v492
    %591 = vmatprep.subr.bf16.mxu0 %v497
    %592 = vmatpush1.bf16.msra.mxu0 %v496
    %593 = vmatprep.subr.bf16.mxu0 %v501
    %594 = vmatpush1.bf16.msra.mxu0 %v500
    %595 = vmatprep.subr.bf16.mxu0 %v505
    %596 = vmatpush1.bf16.msra.mxu0 %v504
    %597 = vmatprep.subr.bf16.mxu0 %v509
    %598 = vmatpush1.bf16.msra.mxu0 %v508
    %599 = vmatprep.subr.bf16.mxu0 0
    %600 = vmatpush1.bf16.msra.mxu0 0
    %601 = vmatprep.subr.bf16.mxu0 0
    %602 = vmatpush1.bf16.msra.mxu0 0
    %603 = vmatprep.subr.bf16.mxu0 0
    %604 = vmatpush1.bf16.msra.mxu0 0
    %605 = vmatprep.subr.bf16.mxu0 0
    %606 = vmatpush1.bf16.msra.mxu0 0
    %607 = vmatprep.subr.bf16.mxu0 0
    %608 = vmatpush1.bf16.msra.mxu0 0
    %609 = vmatprep.subr.bf16.mxu0 0
    %610 = vmatpush1.bf16.msra.mxu0 0
    %611 = vmatprep.subr.bf16.mxu0 0
    %612 = vmatpush1.bf16.msra.mxu0 0
    %613 = vmatprep.subr.bf16.mxu0 0
    %614 = vmatpush1.bf16.msra.mxu0 0
    %615 = vmatprep.mubr.bf16.mxu0 0
    %616 = vmatmul.mubr.bf16.gmra.mrb[0].mxu0 %v381
    %v617 = vpop.f32.mrb[0].mxu0
    %v618 = vadd.f32 0.0, %v617
    %v619 = vpop.f32.mrb[0].mxu0
    %v620 = vadd.f32 0.0, %v619
    %v621 = vpop.f32.mrb[0].mxu0
    %v622 = vpop.f32.mrb[0].mxu0
    %623 = vdwg.mxu0
    %v624 = vadd.f32 %v268, %v577
    %v625 = vadd.f32 %v270, %v579
    %v626 = vadd.f32 %v341, %v618
    %v627 = vadd.f32 %v343, %v620
    %v628 = vxor.u32 %v624, 2147483648
    %v629 = vxor.u32 %v625, 2147483648
    %v630 = vxor.u32 %v626, 2147483648
    %v631 = vmul.f32 %v628, 1.442695
    %v632 = vpow.pop %v631
    %v633 = vmul.f32 %v629, 1.442695
    %v634 = vpow.pop %v633
    %v635 = vmul.f32 %v630, 1.442695
    %v636 = vpow.pop %v635
    %v637 = vadd.f32 %v632, 1.0
    %v638 = vadd.f32 %v634, 1.0
    %v639 = vadd.f32 %v636, 1.0
    %v640 = vrcp.pop %v637
    %v641 = vmul.f32 1.0, %v640
    %v642 = vrcp.pop %v638
    %v643 = vmul.f32 1.0, %v642
    %v644 = vrcp.pop %v639
    %v645 = vmul.f32 1.0, %v644
    %v646 = vtanh.pop %v627
    %v647 = vmul.f32 %v643, %v380
    %v648 = vmul.f32 %v641, %v646
    %v649 = vadd.f32 %v647, %v648
    %v650 = vtanh.pop %v649
    %v651 = vmul.f32 %v645, %v650
    %v652 = vpack.c.bf16 %v651, %v651
    %653 = vst [vmem:[#allocation12] sm:$0xf] %v652
    %654 = vmatprep.subr.bf16.mxu0 %v479
    %655 = vmatpush1.bf16.msra.mxu0 %v478
    %656 = vmatprep.subr.bf16.mxu0 %v483
    %657 = vmatpush1.bf16.msra.mxu0 %v482
    %658 = vmatprep.subr.bf16.mxu0 %v487
    %659 = vmatpush1.bf16.msra.mxu0 %v486
    %660 = vmatprep.subr.bf16.mxu0 %v491
    %661 = vmatpush1.bf16.msra.mxu0 %v490
    %662 = vmatprep.subr.bf16.mxu0 %v495
    %663 = vmatpush1.bf16.msra.mxu0 %v494
    %664 = vmatprep.subr.bf16.mxu0 %v499
    %665 = vmatpush1.bf16.msra.mxu0 %v498
    %666 = vmatprep.subr.bf16.mxu0 %v503
    %667 = vmatpush1.bf16.msra.mxu0 %v502
    %668 = vmatprep.subr.bf16.mxu0 %v507
    %669 = vmatpush1.bf16.msra.mxu0 %v506
    %670 = vmatprep.subr.bf16.mxu0 0
    %671 = vmatpush1.bf16.msra.mxu0 0
    %672 = vmatprep.subr.bf16.mxu0 0
    %673 = vmatpush1.bf16.msra.mxu0 0
    %674 = vmatprep.subr.bf16.mxu0 0
    %675 = vmatpush1.bf16.msra.mxu0 0
    %676 = vmatprep.subr.bf16.mxu0 0
    %677 = vmatpush1.bf16.msra.mxu0 0
    %678 = vmatprep.subr.bf16.mxu0 0
    %679 = vmatpush1.bf16.msra.mxu0 0
    %680 = vmatprep.subr.bf16.mxu0 0
    %681 = vmatpush1.bf16.msra.mxu0 0
    %682 = vmatprep.subr.bf16.mxu0 0
    %683 = vmatpush1.bf16.msra.mxu0 0
    %684 = vmatprep.subr.bf16.mxu0 0
    %685 = vmatpush1.bf16.msra.mxu0 0
    %686 = vmatprep.mubr.bf16.mxu0 0
    %687 = vmatmul.mubr.bf16.gmra.mrb[0].mxu0 %v652
    %v688 = vpop.f32.mrb[0].mxu0
    %v689 = vadd.f32 0.0, %v688
    %v690 = vpop.f32.mrb[0].mxu0
    %v691 = vadd.f32 0.0, %v690
    %v692 = vpop.f32.mrb[0].mxu0
    %v693 = vpop.f32.mrb[0].mxu0
    %694 = vdwg.mxu0
    %695 = vmatprep.subr.bf16.mxu0 %v481
    %696 = vmatpush1.bf16.msra.mxu0 %v480
    %697 = vmatprep.subr.bf16.mxu0 %v485
    %698 = vmatpush1.bf16.msra.mxu0 %v484
    %699 = vmatprep.subr.bf16.mxu0 %v489
    %700 = vmatpush1.bf16.msra.mxu0 %v488
    %701 = vmatprep.subr.bf16.mxu0 %v493
    %702 = vmatpush1.bf16.msra.mxu0 %v492
    %703 = vmatprep.subr.bf16.mxu0 %v497
    %704 = vmatpush1.bf16.msra.mxu0 %v496
    %705 = vmatprep.subr.bf16.mxu0 %v501
    %706 = vmatpush1.bf16.msra.mxu0 %v500
    %707 = vmatprep.subr.bf16.mxu0 %v505
    %708 = vmatpush1.bf16.msra.mxu0 %v504
    %709 = vmatprep.subr.bf16.mxu0 %v509
    %710 = vmatpush1.bf16.msra.mxu0 %v508
    %711 = vmatprep.subr.bf16.mxu0 0
    %712 = vmatpush1.bf16.msra.mxu0 0
    %713 = vmatprep.subr.bf16.mxu0 0
    %714 = vmatpush1.bf16.msra.mxu0 0
    %715 = vmatprep.subr.bf16.mxu0 0
    %716 = vmatpush1.bf16.msra.mxu0 0
    %717 = vmatprep.subr.bf16.mxu0 0
    %718 = vmatpush1.bf16.msra.mxu0 0
    %719 = vmatprep.subr.bf16.mxu0 0
    %720 = vmatpush1.bf16.msra.mxu0 0
    %721 = vmatprep.subr.bf16.mxu0 0
    %722 = vmatpush1.bf16.msra.mxu0 0
    %723 = vmatprep.subr.bf16.mxu0 0
    %724 = vmatpush1.bf16.msra.mxu0 0
    %725 = vmatprep.subr.bf16.mxu0 0
    %726 = vmatpush1.bf16.msra.mxu0 0
    %727 = vmatprep.mubr.bf16.mxu0 0
    %728 = vmatmul.mubr.bf16.gmra.mrb[0].mxu0 %v652
    %v729 = vpop.f32.mrb[0].mxu0
    %v730 = vadd.f32 0.0, %v729
    %v731 = vpop.f32.mrb[0].mxu0
    %v732 = vadd.f32 0.0, %v731
    %v733 = vpop.f32.mrb[0].mxu0
    %v734 = vpop.f32.mrb[0].mxu0
    %735 = vdwg.mxu0
    %v736 = vadd.f32 %v272, %v689
    %v737 = vadd.f32 %v274, %v691
    %v738 = vadd.f32 %v345, %v730
    %v739 = vadd.f32 %v347, %v732
    %v740 = vxor.u32 %v736, 2147483648
    %v741 = vxor.u32 %v737, 2147483648
    %v742 = vxor.u32 %v738, 2147483648
    %v743 = vmul.f32 %v740, 1.442695
    %v744 = vpow.pop %v743
    %v745 = vmul.f32 %v741, 1.442695
    %v746 = vpow.pop %v745
    %v747 = vmul.f32 %v742, 1.442695
    %v748 = vpow.pop %v747
    %v749 = vadd.f32 %v744, 1.0
    %v750 = vadd.f32 %v746, 1.0
    %v751 = vadd.f32 %v748, 1.0
    %v752 = vrcp.pop %v749
    %v753 = vmul.f32 1.0, %v752
    %v754 = vrcp.pop %v750
    %v755 = vmul.f32 1.0, %v754
    %v756 = vrcp.pop %v751
    %v757 = vmul.f32 1.0, %v756
    %v758 = vtanh.pop %v739
    %v759 = vmul.f32 %v755, %v649
    %v760 = vmul.f32 %v753, %v758
    %v761 = vadd.f32 %v759, %v760
    %v762 = vtanh.pop %v761
    %v763 = vmul.f32 %v757, %v762
    %v764 = vpack.c.bf16 %v763, %v763
    %s765 = scalar_lea.vmem [#allocation12], 4
    %766 = vst [vmem:[%s765] sm:$0xf] %v764
    %767 = vmatprep.subr.bf16.mxu0 %v479
    %768 = vmatpush1.bf16.msra.mxu0 %v478
    %769 = vmatprep.subr.bf16.mxu0 %v483
    %770 = vmatpush1.bf16.msra.mxu0 %v482
    %771 = vmatprep.subr.bf16.mxu0 %v487
    %772 = vmatpush1.bf16.msra.mxu0 %v486
    %773 = vmatprep.subr.bf16.mxu0 %v491
    %774 = vmatpush1.bf16.msra.mxu0 %v490
    %775 = vmatprep.subr.bf16.mxu0 %v495
    %776 = vmatpush1.bf16.msra.mxu0 %v494
    %777 = vmatprep.subr.bf16.mxu0 %v499
    %778 = vmatpush1.bf16.msra.mxu0 %v498
    %779 = vmatprep.subr.bf16.mxu0 %v503
    %780 = vmatpush1.bf16.msra.mxu0 %v502
    %781 = vmatprep.subr.bf16.mxu0 %v507
    %782 = vmatpush1.bf16.msra.mxu0 %v506
    %783 = vmatprep.subr.bf16.mxu0 0
    %784 = vmatpush1.bf16.msra.mxu0 0
    %785 = vmatprep.subr.bf16.mxu0 0
    %786 = vmatpush1.bf16.msra.mxu0 0
    %787 = vmatprep.subr.bf16.mxu0 0
    %788 = vmatpush1.bf16.msra.mxu0 0
    %789 = vmatprep.subr.bf16.mxu0 0
    %790 = vmatpush1.bf16.msra.mxu0 0
    %791 = vmatprep.subr.bf16.mxu0 0
    %792 = vmatpush1.bf16.msra.mxu0 0
    %793 = vmatprep.subr.bf16.mxu0 0
    %794 = vmatpush1.bf16.msra.mxu0 0
    %795 = vmatprep.subr.bf16.mxu0 0
    %796 = vmatpush1.bf16.msra.mxu0 0
    %797 = vmatprep.subr.bf16.mxu0 0
    %798 = vmatpush1.bf16.msra.mxu0 0
    %799 = vmatprep.mubr.bf16.mxu0 0
    %800 = vmatmul.mubr.bf16.gmra.mrb[0].mxu0 %v764
    %v801 = vpop.f32.mrb[0].mxu0
    %v802 = vadd.f32 0.0, %v801
    %v803 = vpop.f32.mrb[0].mxu0
    %v804 = vadd.f32 0.0, %v803
    %v805 = vpop.f32.mrb[0].mxu0
    %v806 = vpop.f32.mrb[0].mxu0
    %807 = vdwg.mxu0
    %808 = vmatprep.subr.bf16.mxu0 %v481
    %809 = vmatpush1.bf16.msra.mxu0 %v480
    %810 = vmatprep.subr.bf16.mxu0 %v485
    %811 = vmatpush1.bf16.msra.mxu0 %v484
    %812 = vmatprep.subr.bf16.mxu0 %v489
    %813 = vmatpush1.bf16.msra.mxu0 %v488
    %814 = vmatprep.subr.bf16.mxu0 %v493
    %815 = vmatpush1.bf16.msra.mxu0 %v492
    %816 = vmatprep.subr.bf16.mxu0 %v497
    %817 = vmatpush1.bf16.msra.mxu0 %v496
    %818 = vmatprep.subr.bf16.mxu0 %v501
    %819 = vmatpush1.bf16.msra.mxu0 %v500
    %820 = vmatprep.subr.bf16.mxu0 %v505
    %821 = vmatpush1.bf16.msra.mxu0 %v504
    %822 = vmatprep.subr.bf16.mxu0 %v509
    %823 = vmatpush1.bf16.msra.mxu0 %v508
    %824 = vmatprep.subr.bf16.mxu0 0
    %825 = vmatpush1.bf16.msra.mxu0 0
    %826 = vmatprep.subr.bf16.mxu0 0
    %827 = vmatpush1.bf16.msra.mxu0 0
    %828 = vmatprep.subr.bf16.mxu0 0
    %829 = vmatpush1.bf16.msra.mxu0 0
    %830 = vmatprep.subr.bf16.mxu0 0
    %831 = vmatpush1.bf16.msra.mxu0 0
    %832 = vmatprep.subr.bf16.mxu0 0
    %833 = vmatpush1.bf16.msra.mxu0 0
    %834 = vmatprep.subr.bf16.mxu0 0
    %835 = vmatpush1.bf16.msra.mxu0 0
    %836 = vmatprep.subr.bf16.mxu0 0
    %837 = vmatpush1.bf16.msra.mxu0 0
    %838 = vmatprep.subr.bf16.mxu0 0
    %839 = vmatpush1.bf16.msra.mxu0 0
    %840 = vmatprep.mubr.bf16.mxu0 0
    %841 = vmatmul.mubr.bf16.gmra.mrb[0].mxu0 %v764
    %v842 = vpop.f32.mrb[0].mxu0
    %v843 = vadd.f32 0.0, %v842
    %v844 = vpop.f32.mrb[0].mxu0
    %v845 = vadd.f32 0.0, %v844
    %v846 = vpop.f32.mrb[0].mxu0
    %v847 = vpop.f32.mrb[0].mxu0
    %848 = vdwg.mxu0
    %v849 = vadd.f32 %v278, %v802
    %v850 = vadd.f32 %v280, %v804
    %v851 = vadd.f32 %v351, %v843
    %v852 = vadd.f32 %v353, %v845
    %v853 = vxor.u32 %v849, 2147483648
    %v854 = vxor.u32 %v850, 2147483648
    %v855 = vxor.u32 %v851, 2147483648
    %v856 = vmul.f32 %v853, 1.442695
    %v857 = vpow.pop %v856
    %v858 = vmul.f32 %v854, 1.442695
    %v859 = vpow.pop %v858
    %v860 = vmul.f32 %v855, 1.442695
    %v861 = vpow.pop %v860
    %v862 = vadd.f32 %v857, 1.0
    %v863 = vadd.f32 %v859, 1.0
    %v864 = vadd.f32 %v861, 1.0
    %v865 = vrcp.pop %v862
    %v866 = vmul.f32 1.0, %v865
    %v867 = vrcp.pop %v863
    %v868 = vmul.f32 1.0, %v867
    %v869 = vrcp.pop %v864
    %v870 = vmul.f32 1.0, %v869
    %v871 = vtanh.pop %v852
    %v872 = vmul.f32 %v868, %v761
    %v873 = vmul.f32 %v866, %v871
    %v874 = vadd.f32 %v872, %v873
    %v875 = vtanh.pop %v874
    %v876 = vmul.f32 %v870, %v875
    %v877 = vpack.c.bf16 %v876, %v876
    %s878 = scalar_lea.vmem [#allocation12], 8
    %879 = vst [vmem:[%s878] sm:$0xf] %v877
    %880 = vmatprep.subr.bf16.mxu0 %v479
    %881 = vmatpush1.bf16.msra.mxu0 %v478
    %882 = vmatprep.subr.bf16.mxu0 %v483
    %883 = vmatpush1.bf16.msra.mxu0 %v482
    %884 = vmatprep.subr.bf16.mxu0 %v487
    %885 = vmatpush1.bf16.msra.mxu0 %v486
    %886 = vmatprep.subr.bf16.mxu0 %v491
    %887 = vmatpush1.bf16.msra.mxu0 %v490
    %888 = vmatprep.subr.bf16.mxu0 %v495
    %889 = vmatpush1.bf16.msra.mxu0 %v494
    %890 = vmatprep.subr.bf16.mxu0 %v499
    %891 = vmatpush1.bf16.msra.mxu0 %v498
    %892 = vmatprep.subr.bf16.mxu0 %v503
    %893 = vmatpush1.bf16.msra.mxu0 %v502
    %894 = vmatprep.subr.bf16.mxu0 %v507
    %895 = vmatpush1.bf16.msra.mxu0 %v506
    %896 = vmatprep.subr.bf16.mxu0 0
    %897 = vmatpush1.bf16.msra.mxu0 0
    %898 = vmatprep.subr.bf16.mxu0 0
    %899 = vmatpush1.bf16.msra.mxu0 0
    %900 = vmatprep.subr.bf16.mxu0 0
    %901 = vmatpush1.bf16.msra.mxu0 0
    %902 = vmatprep.subr.bf16.mxu0 0
    %903 = vmatpush1.bf16.msra.mxu0 0
    %904 = vmatprep.subr.bf16.mxu0 0
    %905 = vmatpush1.bf16.msra.mxu0 0
    %906 = vmatprep.subr.bf16.mxu0 0
    %907 = vmatpush1.bf16.msra.mxu0 0
    %908 = vmatprep.subr.bf16.mxu0 0
    %909 = vmatpush1.bf16.msra.mxu0 0
    %910 = vmatprep.subr.bf16.mxu0 0
    %911 = vmatpush1.bf16.msra.mxu0 0
    %912 = vmatprep.mubr.bf16.mxu0 0
    %913 = vmatmul.mubr.bf16.gmra.mrb[0].mxu0 %v877
    %v914 = vpop.f32.mrb[0].mxu0
    %v915 = vadd.f32 0.0, %v914
    %v916 = vpop.f32.mrb[0].mxu0
    %v917 = vadd.f32 0.0, %v916
    %v918 = vpop.f32.mrb[0].mxu0
    %v919 = vpop.f32.mrb[0].mxu0
    %920 = vdwg.mxu0
    %921 = vmatprep.subr.bf16.mxu0 %v481
    %922 = vmatpush1.bf16.msra.mxu0 %v480
    %923 = vmatprep.subr.bf16.mxu0 %v485
    %924 = vmatpush1.bf16.msra.mxu0 %v484
    %925 = vmatprep.subr.bf16.mxu0 %v489
    %926 = vmatpush1.bf16.msra.mxu0 %v488
    %927 = vmatprep.subr.bf16.mxu0 %v493
    %928 = vmatpush1.bf16.msra.mxu0 %v492
    %929 = vmatprep.subr.bf16.mxu0 %v497
    %930 = vmatpush1.bf16.msra.mxu0 %v496
    %931 = vmatprep.subr.bf16.mxu0 %v501
    %932 = vmatpush1.bf16.msra.mxu0 %v500
    %933 = vmatprep.subr.bf16.mxu0 %v505
    %934 = vmatpush1.bf16.msra.mxu0 %v504
    %935 = vmatprep.subr.bf16.mxu0 %v509
    %936 = vmatpush1.bf16.msra.mxu0 %v508
    %937 = vmatprep.subr.bf16.mxu0 0
    %938 = vmatpush1.bf16.msra.mxu0 0
    %939 = vmatprep.subr.bf16.mxu0 0
    %940 = vmatpush1.bf16.msra.mxu0 0
    %941 = vmatprep.subr.bf16.mxu0 0
    %942 = vmatpush1.bf16.msra.mxu0 0
    %943 = vmatprep.subr.bf16.mxu0 0
    %944 = vmatpush1.bf16.msra.mxu0 0
    %945 = vmatprep.subr.bf16.mxu0 0
    %946 = vmatpush1.bf16.msra.mxu0 0
    %947 = vmatprep.subr.bf16.mxu0 0
    %948 = vmatpush1.bf16.msra.mxu0 0
    %949 = vmatprep.subr.bf16.mxu0 0
    %950 = vmatpush1.bf16.msra.mxu0 0
    %951 = vmatprep.subr.bf16.mxu0 0
    %952 = vmatpush1.bf16.msra.mxu0 0
    %953 = vmatprep.mubr.bf16.mxu0 0
    %954 = vmatmul.mubr.bf16.gmra.mrb[0].mxu0 %v877
    %v955 = vpop.f32.mrb[0].mxu0
    %v956 = vadd.f32 0.0, %v955
    %v957 = vpop.f32.mrb[0].mxu0
    %v958 = vadd.f32 0.0, %v957
    %v959 = vpop.f32.mrb[0].mxu0
    %v960 = vpop.f32.mrb[0].mxu0
    %961 = vdwg.mxu0
    %v962 = vadd.f32 %v282, %v915
    %v963 = vadd.f32 %v284, %v917
    %v964 = vadd.f32 %v355, %v956
    %v965 = vadd.f32 %v357, %v958
    %v966 = vxor.u32 %v962, 2147483648
    %v967 = vxor.u32 %v963, 2147483648
    %v968 = vxor.u32 %v964, 2147483648
    %v969 = vmul.f32 %v966, 1.442695
    %v970 = vpow.pop %v969
    %v971 = vmul.f32 %v967, 1.442695
    %v972 = vpow.pop %v971
    %v973 = vmul.f32 %v968, 1.442695
    %v974 = vpow.pop %v973
    %v975 = vadd.f32 %v970, 1.0
    %v976 = vadd.f32 %v972, 1.0
    %v977 = vadd.f32 %v974, 1.0
    %v978 = vrcp.pop %v975
    %v979 = vmul.f32 1.0, %v978
    %v980 = vrcp.pop %v976
    %v981 = vmul.f32 1.0, %v980
    %v982 = vrcp.pop %v977
    %v983 = vmul.f32 1.0, %v982
    %v984 = vtanh.pop %v965
    %v985 = vmul.f32 %v981, %v874
    %v986 = vmul.f32 %v979, %v984
    %v987 = vadd.f32 %v985, %v986
    %v988 = vtanh.pop %v987
    %v989 = vmul.f32 %v983, %v988
    %v990 = vpack.c.bf16 %v989, %v989
    %s991 = scalar_lea.vmem [#allocation12], 12
    %992 = vst [vmem:[%s991] sm:$0xf] %v990
    %993 = vmatprep.subr.bf16.mxu0 %v479
    %994 = vmatpush1.bf16.msra.mxu0 %v478
    %995 = vmatprep.subr.bf16.mxu0 %v483
    %996 = vmatpush1.bf16.msra.mxu0 %v482
    %997 = vmatprep.subr.bf16.mxu0 %v487
    %998 = vmatpush1.bf16.msra.mxu0 %v486
    %999 = vmatprep.subr.bf16.mxu0 %v491
    %1000 = vmatpush1.bf16.msra.mxu0 %v490
    %1001 = vmatprep.subr.bf16.mxu0 %v495
    %1002 = vmatpush1.bf16.msra.mxu0 %v494
    %1003 = vmatprep.subr.bf16.mxu0 %v499
    %1004 = vmatpush1.bf16.msra.mxu0 %v498
    %1005 = vmatprep.subr.bf16.mxu0 %v503
    %1006 = vmatpush1.bf16.msra.mxu0 %v502
    %1007 = vmatprep.subr.bf16.mxu0 %v507
    %1008 = vmatpush1.bf16.msra.mxu0 %v506
    %1009 = vmatprep.subr.bf16.mxu0 0
    %1010 = vmatpush1.bf16.msra.mxu0 0
    %1011 = vmatprep.subr.bf16.mxu0 0
    %1012 = vmatpush1.bf16.msra.mxu0 0
    %1013 = vmatprep.subr.bf16.mxu0 0
    %1014 = vmatpush1.bf16.msra.mxu0 0
    %1015 = vmatprep.subr.bf16.mxu0 0
    %1016 = vmatpush1.bf16.msra.mxu0 0
    %1017 = vmatprep.subr.bf16.mxu0 0
    %1018 = vmatpush1.bf16.msra.mxu0 0
    %1019 = vmatprep.subr.bf16.mxu0 0
    %1020 = vmatpush1.bf16.msra.mxu0 0
    %1021 = vmatprep.subr.bf16.mxu0 0
    %1022 = vmatpush1.bf16.msra.mxu0 0
    %1023 = vmatprep.subr.bf16.mxu0 0
    %1024 = vmatpush1.bf16.msra.mxu0 0
    %1025 = vmatprep.mubr.bf16.mxu0 0
    %1026 = vmatmul.mubr.bf16.gmra.mrb[0].mxu0 %v990
    %v1027 = vpop.f32.mrb[0].mxu0
    %v1028 = vadd.f32 0.0, %v1027
    %v1029 = vpop.f32.mrb[0].mxu0
    %v1030 = vadd.f32 0.0, %v1029
    %v1031 = vpop.f32.mrb[0].mxu0
    %v1032 = vpop.f32.mrb[0].mxu0
    %1033 = vdwg.mxu0
    %1034 = vmatprep.subr.bf16.mxu0 %v481
    %1035 = vmatpush1.bf16.msra.mxu0 %v480
    %1036 = vmatprep.subr.bf16.mxu0 %v485
    %1037 = vmatpush1.bf16.msra.mxu0 %v484
    %1038 = vmatprep.subr.bf16.mxu0 %v489
    %1039 = vmatpush1.bf16.msra.mxu0 %v488
    %1040 = vmatprep.subr.bf16.mxu0 %v493
    %1041 = vmatpush1.bf16.msra.mxu0 %v492
    %1042 = vmatprep.subr.bf16.mxu0 %v497
    %1043 = vmatpush1.bf16.msra.mxu0 %v496
    %1044 = vmatprep.subr.bf16.mxu0 %v501
    %1045 = vmatpush1.bf16.msra.mxu0 %v500
    %1046 = vmatprep.subr.bf16.mxu0 %v505
    %1047 = vmatpush1.bf16.msra.mxu0 %v504
    %1048 = vmatprep.subr.bf16.mxu0 %v509
    %1049 = vmatpush1.bf16.msra.mxu0 %v508
    %1050 = vmatprep.subr.bf16.mxu0 0
    %1051 = vmatpush1.bf16.msra.mxu0 0
    %1052 = vmatprep.subr.bf16.mxu0 0
    %1053 = vmatpush1.bf16.msra.mxu0 0
    %1054 = vmatprep.subr.bf16.mxu0 0
    %1055 = vmatpush1.bf16.msra.mxu0 0
    %1056 = vmatprep.subr.bf16.mxu0 0
    %1057 = vmatpush1.bf16.msra.mxu0 0
    %1058 = vmatprep.subr.bf16.mxu0 0
    %1059 = vmatpush1.bf16.msra.mxu0 0
    %1060 = vmatprep.subr.bf16.mxu0 0
    %1061 = vmatpush1.bf16.msra.mxu0 0
    %1062 = vmatprep.subr.bf16.mxu0 0
    %1063 = vmatpush1.bf16.msra.mxu0 0
    %1064 = vmatprep.subr.bf16.mxu0 0
    %1065 = vmatpush1.bf16.msra.mxu0 0
    %1066 = vmatprep.mubr.bf16.mxu0 0
    %1067 = vmatmul.mubr.bf16.gmra.mrb[0].mxu0 %v990
    %v1068 = vpop.f32.mrb[0].mxu0
    %v1069 = vadd.f32 0.0, %v1068
    %v1070 = vpop.f32.mrb[0].mxu0
    %v1071 = vadd.f32 0.0, %v1070
    %v1072 = vpop.f32.mrb[0].mxu0
    %v1073 = vpop.f32.mrb[0].mxu0
    %1074 = vdwg.mxu0
    %v1075 = vadd.f32 %v288, %v1028
    %v1076 = vadd.f32 %v290, %v1030
    %v1077 = vadd.f32 %v361, %v1069
    %v1078 = vadd.f32 %v363, %v1071
    %v1079 = vxor.u32 %v1075, 2147483648
    %v1080 = vxor.u32 %v1076, 2147483648
    %v1081 = vxor.u32 %v1077, 2147483648
    %v1082 = vmul.f32 %v1079, 1.442695
    %v1083 = vpow.pop %v1082
    %v1084 = vmul.f32 %v1080, 1.442695
    %v1085 = vpow.pop %v1084
    %v1086 = vmul.f32 %v1081, 1.442695
    %v1087 = vpow.pop %v1086
    %v1088 = vadd.f32 %v1083, 1.0
    %v1089 = vadd.f32 %v1085, 1.0
    %v1090 = vadd.f32 %v1087, 1.0
    %v1091 = vrcp.pop %v1088
    %v1092 = vmul.f32 1.0, %v1091
    %v1093 = vrcp.pop %v1089
    %v1094 = vmul.f32 1.0, %v1093
    %v1095 = vrcp.pop %v1090
    %v1096 = vmul.f32 1.0, %v1095
    %v1097 = vtanh.pop %v1078
    %v1098 = vmul.f32 %v1094, %v987
    %v1099 = vmul.f32 %v1092, %v1097
    %v1100 = vadd.f32 %v1098, %v1099
    %v1101 = vtanh.pop %v1100
    %v1102 = vmul.f32 %v1096, %v1101
    %v1103 = vpack.c.bf16 %v1102, %v1102
    %s1104 = scalar_lea.vmem [#allocation12], 16
    %1105 = vst [vmem:[%s1104] sm:$0xf] %v1103
    %1106 = vmatprep.subr.bf16.mxu0 %v479
    %1107 = vmatpush1.bf16.msra.mxu0 %v478
    %1108 = vmatprep.subr.bf16.mxu0 %v483
    %1109 = vmatpush1.bf16.msra.mxu0 %v482
    %1110 = vmatprep.subr.bf16.mxu0 %v487
    %1111 = vmatpush1.bf16.msra.mxu0 %v486
    %1112 = vmatprep.subr.bf16.mxu0 %v491
    %1113 = vmatpush1.bf16.msra.mxu0 %v490
    %1114 = vmatprep.subr.bf16.mxu0 %v495
    %1115 = vmatpush1.bf16.msra.mxu0 %v494
    %1116 = vmatprep.subr.bf16.mxu0 %v499
    %1117 = vmatpush1.bf16.msra.mxu0 %v498
    %1118 = vmatprep.subr.bf16.mxu0 %v503
    %1119 = vmatpush1.bf16.msra.mxu0 %v502
    %1120 = vmatprep.subr.bf16.mxu0 %v507
    %1121 = vmatpush1.bf16.msra.mxu0 %v506
    %1122 = vmatprep.subr.bf16.mxu0 0
    %1123 = vmatpush1.bf16.msra.mxu0 0
    %1124 = vmatprep.subr.bf16.mxu0 0
    %1125 = vmatpush1.bf16.msra.mxu0 0
    %1126 = vmatprep.subr.bf16.mxu0 0
    %1127 = vmatpush1.bf16.msra.mxu0 0
    %1128 = vmatprep.subr.bf16.mxu0 0
    %1129 = vmatpush1.bf16.msra.mxu0 0
    %1130 = vmatprep.subr.bf16.mxu0 0
    %1131 = vmatpush1.bf16.msra.mxu0 0
    %1132 = vmatprep.subr.bf16.mxu0 0
    %1133 = vmatpush1.bf16.msra.mxu0 0
    %1134 = vmatprep.subr.bf16.mxu0 0
    %1135 = vmatpush1.bf16.msra.mxu0 0
    %1136 = vmatprep.subr.bf16.mxu0 0
    %1137 = vmatpush1.bf16.msra.mxu0 0
    %1138 = vmatprep.mubr.bf16.mxu0 0
    %1139 = vmatmul.mubr.bf16.gmra.mrb[0].mxu0 %v1103
    %v1140 = vpop.f32.mrb[0].mxu0
    %v1141 = vadd.f32 0.0, %v1140
    %v1142 = vpop.f32.mrb[0].mxu0
    %v1143 = vadd.f32 0.0, %v1142
    %v1144 = vpop.f32.mrb[0].mxu0
    %v1145 = vpop.f32.mrb[0].mxu0
    %1146 = vdwg.mxu0
    %1147 = vmatprep.subr.bf16.mxu0 %v481
    %1148 = vmatpush1.bf16.msra.mxu0 %v480
    %1149 = vmatprep.subr.bf16.mxu0 %v485
    %1150 = vmatpush1.bf16.msra.mxu0 %v484
    %1151 = vmatprep.subr.bf16.mxu0 %v489
    %1152 = vmatpush1.bf16.msra.mxu0 %v488
    %1153 = vmatprep.subr.bf16.mxu0 %v493
    %1154 = vmatpush1.bf16.msra.mxu0 %v492
    %1155 = vmatprep.subr.bf16.mxu0 %v497
    %1156 = vmatpush1.bf16.msra.mxu0 %v496
    %1157 = vmatprep.subr.bf16.mxu0 %v501
    %1158 = vmatpush1.bf16.msra.mxu0 %v500
    %1159 = vmatprep.subr.bf16.mxu0 %v505
    %1160 = vmatpush1.bf16.msra.mxu0 %v504
    %1161 = vmatprep.subr.bf16.mxu0 %v509
    %1162 = vmatpush1.bf16.msra.mxu0 %v508
    %1163 = vmatprep.subr.bf16.mxu0 0
    %1164 = vmatpush1.bf16.msra.mxu0 0
    %1165 = vmatprep.subr.bf16.mxu0 0
    %1166 = vmatpush1.bf16.msra.mxu0 0
    %1167 = vmatprep.subr.bf16.mxu0 0
    %1168 = vmatpush1.bf16.msra.mxu0 0
    %1169 = vmatprep.subr.bf16.mxu0 0
    %1170 = vmatpush1.bf16.msra.mxu0 0
    %1171 = vmatprep.subr.bf16.mxu0 0
    %1172 = vmatpush1.bf16.msra.mxu0 0
    %1173 = vmatprep.subr.bf16.mxu0 0
    %1174 = vmatpush1.bf16.msra.mxu0 0
    %1175 = vmatprep.subr.bf16.mxu0 0
    %1176 = vmatpush1.bf16.msra.mxu0 0
    %1177 = vmatprep.subr.bf16.mxu0 0
    %1178 = vmatpush1.bf16.msra.mxu0 0
    %1179 = vmatprep.mubr.bf16.mxu0 0
    %1180 = vmatmul.mubr.bf16.gmra.mrb[0].mxu0 %v1103
    %v1181 = vpop.f32.mrb[0].mxu0
    %v1182 = vadd.f32 0.0, %v1181
    %v1183 = vpop.f32.mrb[0].mxu0
    %v1184 = vadd.f32 0.0, %v1183
    %v1185 = vpop.f32.mrb[0].mxu0
    %v1186 = vpop.f32.mrb[0].mxu0
    %1187 = vdwg.mxu0
    %v1188 = vadd.f32 %v292, %v1141
    %v1189 = vadd.f32 %v294, %v1143
    %v1190 = vadd.f32 %v365, %v1182
    %v1191 = vadd.f32 %v367, %v1184
    %v1192 = vxor.u32 %v1188, 2147483648
    %v1193 = vxor.u32 %v1189, 2147483648
    %v1194 = vxor.u32 %v1190, 2147483648
    %v1195 = vmul.f32 %v1192, 1.442695
    %v1196 = vpow.pop %v1195
    %v1197 = vmul.f32 %v1193, 1.442695
    %v1198 = vpow.pop %v1197
    %v1199 = vmul.f32 %v1194, 1.442695
    %v1200 = vpow.pop %v1199
    %v1201 = vadd.f32 %v1196, 1.0
    %v1202 = vadd.f32 %v1198, 1.0
    %v1203 = vadd.f32 %v1200, 1.0
    %v1204 = vrcp.pop %v1201
    %v1205 = vmul.f32 1.0, %v1204
    %v1206 = vrcp.pop %v1202
    %v1207 = vmul.f32 1.0, %v1206
    %v1208 = vrcp.pop %v1203
    %v1209 = vmul.f32 1.0, %v1208
    %v1210 = vtanh.pop %v1191
    %v1211 = vmul.f32 %v1207, %v1100
    %v1212 = vmul.f32 %v1205, %v1210
    %v1213 = vadd.f32 %v1211, %v1212
    %v1214 = vtanh.pop %v1213
    %v1215 = vmul.f32 %v1209, %v1214
    %v1216 = vpack.c.bf16 %v1215, %v1215
    %s1217 = scalar_lea.vmem [#allocation12], 20
    %1218 = vst [vmem:[%s1217] sm:$0xf] %v1216
    %1219 = vmatprep.subr.bf16.mxu0 %v479
    %1220 = vmatpush1.bf16.msra.mxu0 %v478
    %1221 = vmatprep.subr.bf16.mxu0 %v483
    %1222 = vmatpush1.bf16.msra.mxu0 %v482
    %1223 = vmatprep.subr.bf16.mxu0 %v487
    %1224 = vmatpush1.bf16.msra.mxu0 %v486
    %1225 = vmatprep.subr.bf16.mxu0 %v491
    %1226 = vmatpush1.bf16.msra.mxu0 %v490
    %1227 = vmatprep.subr.bf16.mxu0 %v495
    %1228 = vmatpush1.bf16.msra.mxu0 %v494
    %1229 = vmatprep.subr.bf16.mxu0 %v499
    %1230 = vmatpush1.bf16.msra.mxu0 %v498
    %1231 = vmatprep.subr.bf16.mxu0 %v503
    %1232 = vmatpush1.bf16.msra.mxu0 %v502
    %1233 = vmatprep.subr.bf16.mxu0 %v507
    %1234 = vmatpush1.bf16.msra.mxu0 %v506
    %1235 = vmatprep.subr.bf16.mxu0 0
    %1236 = vmatpush1.bf16.msra.mxu0 0
    %1237 = vmatprep.subr.bf16.mxu0 0
    %1238 = vmatpush1.bf16.msra.mxu0 0
    %1239 = vmatprep.subr.bf16.mxu0 0
    %1240 = vmatpush1.bf16.msra.mxu0 0
    %1241 = vmatprep.subr.bf16.mxu0 0
    %1242 = vmatpush1.bf16.msra.mxu0 0
    %1243 = vmatprep.subr.bf16.mxu0 0
    %1244 = vmatpush1.bf16.msra.mxu0 0
    %1245 = vmatprep.subr.bf16.mxu0 0
    %1246 = vmatpush1.bf16.msra.mxu0 0
    %1247 = vmatprep.subr.bf16.mxu0 0
    %1248 = vmatpush1.bf16.msra.mxu0 0
    %1249 = vmatprep.subr.bf16.mxu0 0
    %1250 = vmatpush1.bf16.msra.mxu0 0
    %1251 = vmatprep.mubr.bf16.mxu0 0
    %1252 = vmatmul.mubr.bf16.gmra.mrb[0].mxu0 %v1216
    %v1253 = vpop.f32.mrb[0].mxu0
    %v1254 = vadd.f32 0.0, %v1253
    %v1255 = vpop.f32.mrb[0].mxu0
    %v1256 = vadd.f32 0.0, %v1255
    %v1257 = vpop.f32.mrb[0].mxu0
    %v1258 = vpop.f32.mrb[0].mxu0
    %1259 = vdwg.mxu0
    %1260 = vmatprep.subr.bf16.mxu0 %v481
    %1261 = vmatpush1.bf16.msra.mxu0 %v480
    %1262 = vmatprep.subr.bf16.mxu0 %v485
    %1263 = vmatpush1.bf16.msra.mxu0 %v484
    %1264 = vmatprep.subr.bf16.mxu0 %v489
    %1265 = vmatpush1.bf16.msra.mxu0 %v488
    %1266 = vmatprep.subr.bf16.mxu0 %v493
    %1267 = vmatpush1.bf16.msra.mxu0 %v492
    %1268 = vmatprep.subr.bf16.mxu0 %v497
    %1269 = vmatpush1.bf16.msra.mxu0 %v496
    %1270 = vmatprep.subr.bf16.mxu0 %v501
    %1271 = vmatpush1.bf16.msra.mxu0 %v500
    %1272 = vmatprep.subr.bf16.mxu0 %v505
    %1273 = vmatpush1.bf16.msra.mxu0 %v504
    %1274 = vmatprep.subr.bf16.mxu0 %v509
    %1275 = vmatpush1.bf16.msra.mxu0 %v508
    %1276 = vmatprep.subr.bf16.mxu0 0
    %1277 = vmatpush1.bf16.msra.mxu0 0
    %1278 = vmatprep.subr.bf16.mxu0 0
    %1279 = vmatpush1.bf16.msra.mxu0 0
    %1280 = vmatprep.subr.bf16.mxu0 0
    %1281 = vmatpush1.bf16.msra.mxu0 0
    %1282 = vmatprep.subr.bf16.mxu0 0
    %1283 = vmatpush1.bf16.msra.mxu0 0
    %1284 = vmatprep.subr.bf16.mxu0 0
    %1285 = vmatpush1.bf16.msra.mxu0 0
    %1286 = vmatprep.subr.bf16.mxu0 0
    %1287 = vmatpush1.bf16.msra.mxu0 0
    %1288 = vmatprep.subr.bf16.mxu0 0
    %1289 = vmatpush1.bf16.msra.mxu0 0
    %1290 = vmatprep.subr.bf16.mxu0 0
    %1291 = vmatpush1.bf16.msra.mxu0 0
    %1292 = vmatprep.mubr.bf16.mxu0 0
    %1293 = vmatmul.mubr.bf16.gmra.mrb[0].mxu0 %v1216
    %v1294 = vpop.f32.mrb[0].mxu0
    %v1295 = vadd.f32 0.0, %v1294
    %v1296 = vpop.f32.mrb[0].mxu0
    %v1297 = vadd.f32 0.0, %v1296
    %v1298 = vpop.f32.mrb[0].mxu0
    %v1299 = vpop.f32.mrb[0].mxu0
    %1300 = vdwg.mxu0
    %v1301 = vadd.f32 %v298, %v1254
    %v1302 = vadd.f32 %v300, %v1256
    %v1303 = vadd.f32 %v371, %v1295
    %v1304 = vadd.f32 %v373, %v1297
    %v1305 = vxor.u32 %v1301, 2147483648
    %v1306 = vxor.u32 %v1302, 2147483648
    %v1307 = vxor.u32 %v1303, 2147483648
    %v1308 = vmul.f32 %v1305, 1.442695
    %v1309 = vpow.pop %v1308
    %v1310 = vmul.f32 %v1306, 1.442695
    %v1311 = vpow.pop %v1310
    %v1312 = vmul.f32 %v1307, 1.442695
    %v1313 = vpow.pop %v1312
    %v1314 = vadd.f32 %v1309, 1.0
    %v1315 = vadd.f32 %v1311, 1.0
    %v1316 = vadd.f32 %v1313, 1.0
    %v1317 = vrcp.pop %v1314
    %v1318 = vmul.f32 1.0, %v1317
    %v1319 = vrcp.pop %v1315
    %v1320 = vmul.f32 1.0, %v1319
    %v1321 = vrcp.pop %v1316
    %v1322 = vmul.f32 1.0, %v1321
    %v1323 = vtanh.pop %v1304
    %v1324 = vmul.f32 %v1320, %v1213
    %v1325 = vmul.f32 %v1318, %v1323
    %v1326 = vadd.f32 %v1324, %v1325
    %v1327 = vtanh.pop %v1326
    %v1328 = vmul.f32 %v1322, %v1327
    %v1329 = vpack.c.bf16 %v1328, %v1328
    %s1330 = scalar_lea.vmem [#allocation12], 24
    %1331 = vst [vmem:[%s1330] sm:$0xf] %v1329
    %1332 = vmatprep.subr.bf16.mxu0 %v479
    %1333 = vmatpush1.bf16.msra.mxu0 %v478
    %1334 = vmatprep.subr.bf16.mxu0 %v483
    %1335 = vmatpush1.bf16.msra.mxu0 %v482
    %1336 = vmatprep.subr.bf16.mxu0 %v487
    %1337 = vmatpush1.bf16.msra.mxu0 %v486
    %1338 = vmatprep.subr.bf16.mxu0 %v491
    %1339 = vmatpush1.bf16.msra.mxu0 %v490
    %1340 = vmatprep.subr.bf16.mxu0 %v495
    %1341 = vmatpush1.bf16.msra.mxu0 %v494
    %1342 = vmatprep.subr.bf16.mxu0 %v499
    %1343 = vmatpush1.bf16.msra.mxu0 %v498
    %1344 = vmatprep.subr.bf16.mxu0 %v503
    %1345 = vmatpush1.bf16.msra.mxu0 %v502
    %1346 = vmatprep.subr.bf16.mxu0 %v507
    %1347 = vmatpush1.bf16.msra.mxu0 %v506
    %1348 = vmatprep.subr.bf16.mxu0 0
    %1349 = vmatpush1.bf16.msra.mxu0 0
    %1350 = vmatprep.subr.bf16.mxu0 0
    %1351 = vmatpush1.bf16.msra.mxu0 0
    %1352 = vmatprep.subr.bf16.mxu0 0
    %1353 = vmatpush1.bf16.msra.mxu0 0
    %1354 = vmatprep.subr.bf16.mxu0 0
    %1355 = vmatpush1.bf16.msra.mxu0 0
    %1356 = vmatprep.subr.bf16.mxu0 0
    %1357 = vmatpush1.bf16.msra.mxu0 0
    %1358 = vmatprep.subr.bf16.mxu0 0
    %1359 = vmatpush1.bf16.msra.mxu0 0
    %1360 = vmatprep.subr.bf16.mxu0 0
    %1361 = vmatpush1.bf16.msra.mxu0 0
    %1362 = vmatprep.subr.bf16.mxu0 0
    %1363 = vmatpush1.bf16.msra.mxu0 0
    %1364 = vmatprep.mubr.bf16.mxu0 0
    %1365 = vmatmul.mubr.bf16.gmra.mrb[0].mxu0 %v1329
    %v1366 = vpop.f32.mrb[0].mxu0
    %v1367 = vadd.f32 0.0, %v1366
    %v1368 = vpop.f32.mrb[0].mxu0
    %v1369 = vadd.f32 0.0, %v1368
    %v1370 = vpop.f32.mrb[0].mxu0
    %v1371 = vpop.f32.mrb[0].mxu0
    %1372 = vdwg.mxu0
    %1373 = vmatprep.subr.bf16.mxu0 %v481
    %1374 = vmatpush1.bf16.msra.mxu0 %v480
    %1375 = vmatprep.subr.bf16.mxu0 %v485
    %1376 = vmatpush1.bf16.msra.mxu0 %v484
    %1377 = vmatprep.subr.bf16.mxu0 %v489
    %1378 = vmatpush1.bf16.msra.mxu0 %v488
    %1379 = vmatprep.subr.bf16.mxu0 %v493
    %1380 = vmatpush1.bf16.msra.mxu0 %v492
    %1381 = vmatprep.subr.bf16.mxu0 %v497
    %1382 = vmatpush1.bf16.msra.mxu0 %v496
    %1383 = vmatprep.subr.bf16.mxu0 %v501
    %1384 = vmatpush1.bf16.msra.mxu0 %v500
    %1385 = vmatprep.subr.bf16.mxu0 %v505
    %1386 = vmatpush1.bf16.msra.mxu0 %v504
    %1387 = vmatprep.subr.bf16.mxu0 %v509
    %1388 = vmatpush1.bf16.msra.mxu0 %v508
    %1389 = vmatprep.subr.bf16.mxu0 0
    %1390 = vmatpush1.bf16.msra.mxu0 0
    %1391 = vmatprep.subr.bf16.mxu0 0
    %1392 = vmatpush1.bf16.msra.mxu0 0
    %1393 = vmatprep.subr.bf16.mxu0 0
    %1394 = vmatpush1.bf16.msra.mxu0 0
    %1395 = vmatprep.subr.bf16.mxu0 0
    %1396 = vmatpush1.bf16.msra.mxu0 0
    %1397 = vmatprep.subr.bf16.mxu0 0
    %1398 = vmatpush1.bf16.msra.mxu0 0
    %1399 = vmatprep.subr.bf16.mxu0 0
    %1400 = vmatpush1.bf16.msra.mxu0 0
    %1401 = vmatprep.subr.bf16.mxu0 0
    %1402 = vmatpush1.bf16.msra.mxu0 0
    %1403 = vmatprep.subr.bf16.mxu0 0
    %1404 = vmatpush1.bf16.msra.mxu0 0
    %1405 = vmatprep.mubr.bf16.mxu0 0
    %1406 = vmatmul.mubr.bf16.gmra.mrb[0].mxu0 %v1329
    %v1407 = vpop.f32.mrb[0].mxu0
    %v1408 = vadd.f32 0.0, %v1407
    %v1409 = vpop.f32.mrb[0].mxu0
    %v1410 = vadd.f32 0.0, %v1409
    %v1411 = vpop.f32.mrb[0].mxu0
    %v1412 = vpop.f32.mrb[0].mxu0
    %1413 = vdwg.mxu0
    %v1414 = vadd.f32 %v302, %v1367
    %v1415 = vadd.f32 %v304, %v1369
    %v1416 = vadd.f32 %v375, %v1408
    %v1417 = vadd.f32 %v377, %v1410
    %v1418 = vxor.u32 %v1414, 2147483648
    %v1419 = vxor.u32 %v1415, 2147483648
    %v1420 = vxor.u32 %v1416, 2147483648
    %v1421 = vmul.f32 %v1418, 1.442695
    %v1422 = vpow.pop %v1421
    %v1423 = vmul.f32 %v1419, 1.442695
    %v1424 = vpow.pop %v1423
    %v1425 = vmul.f32 %v1420, 1.442695
    %v1426 = vpow.pop %v1425
    %v1427 = vadd.f32 %v1422, 1.0
    %v1428 = vadd.f32 %v1424, 1.0
    %v1429 = vadd.f32 %v1426, 1.0
    %v1430 = vrcp.pop %v1427
    %v1431 = vmul.f32 1.0, %v1430
    %v1432 = vrcp.pop %v1428
    %v1433 = vmul.f32 1.0, %v1432
    %v1434 = vrcp.pop %v1429
    %v1435 = vmul.f32 1.0, %v1434
    %v1436 = vtanh.pop %v1417
    %v1437 = vmul.f32 %v1433, %v1326
    %v1438 = vmul.f32 %v1431, %v1436
    %v1439 = vadd.f32 %v1437, %v1438
    %v1440 = vtanh.pop %v1439
    %v1441 = vmul.f32 %v1435, %v1440
    %v1442 = vpack.c.bf16 %v1441, %v1441
    %s1443 = scalar_lea.vmem [#allocation12], 28
    %1444 = vst [vmem:[%s1443] sm:$0xf] %v1442
    %1445 = vst [vmem:[#allocation2] sm:$0xff] %v1441
    %1446 = vst [vmem:[#allocation3] sm:$0xff] %v1439
    // Predicated region
    $region46: #{tpu_custom_call.1} parent=1 // pred_check
      %p1447 = pneg %p82
    $region47: #{tpu_custom_call.1} parent=1 // pred_check_branch
      %1449 = sbr.rel (%p1447) target = $region49
    $region48: #{tpu_custom_call.1} parent=1 // pred_region
      %1450 = vst [vmem:[#allocation13] sm:$0xff] %v1441
      %1451 = vst [vmem:[#allocation15] sm:$0xff] %v1439
    $region49: #{tpu_custom_call.1} parent=1 // pred_fallthru
      _
    // Predicated region
    $region50: #{tpu_custom_call.1} parent=1 // pred_check
      _
    $region51: #{tpu_custom_call.1} parent=1 // pred_check_branch
      %1453 = sbr.rel (0) target = $region53
    $region52: #{tpu_custom_call.1} parent=1 // pred_region
      %s1455 = ssub.s32 512, 512
      %1456 = vsyncadd [#allocation6], %s1455
      %s1457 = sshll.u32 [#allocation12], 4
      %s1458 = int_to_ptr.vmem [resolvable:$true] %s1457
      %1463 = dma.vmem_to_hbm [thread:$0]  %s1458, 512, %s6, [#allocation6], 64, 64, 4
    $region53: #{tpu_custom_call.1} parent=1 // pred_fallthru
      _
    // Predicated region
    $region54: #{tpu_custom_call.1} parent=1 // pred_check
      _
    $region55: #{tpu_custom_call.1} parent=1 // pred_check_branch
      %1465 = sbr.rel (0) target = $region57
    $region56: #{tpu_custom_call.1} parent=1 // pred_region
      %s1467 = ssub.s32 128, 128
      %1468 = vsyncadd [#allocation14], %s1467
      %s1470 = sshll.u32 [#allocation13], 4
      %s1471 = int_to_ptr.vmem [resolvable:$true] %s1470
      %1473 = dma.vmem_to_hbm [thread:$0]  %s1471, 128, %s7, [#allocation14]
    $region57: #{tpu_custom_call.1} parent=1 // pred_fallthru
      _
    // Predicated region
    $region58: #{tpu_custom_call.1} parent=1 // pred_check
      _
    $region59: #{tpu_custom_call.1} parent=1 // pred_check_branch
      %1475 = sbr.rel (0) target = $region61
    $region60: #{tpu_custom_call.1} parent=1 // pred_region
      %s1477 = ssub.s32 128, 128
      %1478 = vsyncadd [#allocation14], %s1477
      %s1480 = sshll.u32 [#allocation15], 4
      %s1481 = int_to_ptr.vmem [resolvable:$true] %s1480
      %1483 = dma.vmem_to_hbm [thread:$0]  %s1481, 128, %s8, [#allocation14]
    $region61: #{tpu_custom_call.1} parent=1 // pred_fallthru
      _
    // Predicated region
    $region62: #{tpu_custom_call.1} parent=1 // pred_check
      _
    $region63: #{tpu_custom_call.1} parent=1 // pred_check_branch
      %1485 = sbr.rel (0) target = $region65
    $region64: #{tpu_custom_call.1} parent=1 // pred_region
      %1486 = dma.done [#allocation6], 512
    $region65: #{tpu_custom_call.1} parent=1 // pred_fallthru
      _
    // Predicated region
    $region66: #{tpu_custom_call.1} parent=1 // pred_check
      _
    $region67: #{tpu_custom_call.1} parent=1 // pred_check_branch
      %1488 = sbr.rel (0) target = $region69
    $region68: #{tpu_custom_call.1} parent=1 // pred_region
      %1489 = dma.done [#allocation14], 128
    $region69: #{tpu_custom_call.1} parent=1 // pred_fallthru
      _
    // Predicated region
    $region70: #{tpu_custom_call.1} parent=1 // pred_check
      _
    $region71: #{tpu_custom_call.1} parent=1 // pred_check_branch
      %1491 = sbr.rel (0) target = $region73
    $region72: #{tpu_custom_call.1} parent=1 // pred_region
      %1492 = dma.done [#allocation14], 128
    $region73: #{tpu_custom_call.1} parent=1 // pred_fallthru
      _
    %1493 = vsyncpa [#allocation5], 1
    %1494 = vsyncpa [#allocation8], 1
    %1495 = vsyncpa [#allocation11], 1
    %1496 = vsyncpa [#allocation6], 1
    %1497 = vsyncpa [#allocation14], 1

</llo_original>
